<compile_context>
chip_gen: v7x
topology: tpu7x:2x2x1
jax: 0.10.0
libtpu: 0.0.40
codegen_flags: <defaults>
</compile_context>

<pallas_src>
import functools

import jax
import jax.numpy as jnp
from jax.experimental import pallas as pl
from jax.experimental.pallas import tpu as pltpu


def _round_up(x: int, m: int) -> int:
    return (x + m - 1) // m * m


# --------------------------------------------------------------------------- #
# Kernel body
# --------------------------------------------------------------------------- #
def _qfunction_kernel(obs_ref, act_ref, wenc_ref, whead_ref, bhead_ref,
                      q_ref, *, tau: float):
    # obs_ref   : (TILE_B, obs_dim)  batch-major obs tile (streamed)
    # act_ref   : (TILE_B, A)        batch-major action tile (streamed)
    # wenc_ref  : (S, obs_dim)       encoder weight (constant block)
    # whead_ref : (A, S)             head weight reshaped (constant block)
    # bhead_ref : (1, 1)             scalar bias in SMEM
    # q_ref     : (1, TILE_B)        lane-dense output tile
    obs = obs_ref[...].astype(jnp.float32)

    # Encoder in feature-major layout: enc_t[s, b] = sum_o W_enc[s, o] * obs[b, o].
    enc_t = jax.lax.dot_general(
        wenc_ref[...], obs,
        dimension_numbers=(((1,), (1,)), ((), ())),
        preferred_element_type=jnp.float32)                       # (S, TILE_B)

    # Temperature + numerically stable exp; softmax normalization is deferred.
    enc_t = enc_t * (1.0 / tau)
    e = jnp.exp(enc_t - jnp.max(enc_t, axis=0, keepdims=True))    # (S, TILE_B)
    denom = jnp.sum(e, axis=0, keepdims=True)                     # (1, TILE_B)

    # Fused kron(action, softmax(enc)) + head:
    #   q[b] = sum_{a,s} act[b,a] * W_head[a,s] * e[s,b] / denom[b] + bias
    t = jnp.dot(whead_ref[...], e,
                preferred_element_type=jnp.float32)               # (A, TILE_B)
    # Action arrives batch-major; transpose the small tile in-kernel (XLU slot,
    # hidden under the obs DMA) instead of paying an extra HBM pass outside.
    act_t = jnp.transpose(act_ref[...].astype(jnp.float32))       # (A, TILE_B)
    num = jnp.sum(act_t * t, axis=0, keepdims=True)               # (1, TILE_B)

    q_ref[...] = (num / denom + bhead_ref[0, 0]).astype(q_ref.dtype)


# --------------------------------------------------------------------------- #
# Tiling / VMEM planning
# --------------------------------------------------------------------------- #
def _vmem_capacity_bytes() -> int:
    try:
        cap = int(pltpu.get_tpu_info().vmem_capacity_bytes)
        if cap > 0:
            return cap
    except Exception:
        pass
    return 64 << 20     # conservative fallback: smallest physical VMEM (v7x)


def _plan_tiling(batch: int, obs_dim: int, action_dim: int,
                 obs_itemsize: int, act_itemsize: int,
                 tile_b: int | None = None):
    """Pick TILE_B and vmem_limit_bytes per TPU generation.

    VMEM accounting includes the (8,128)-tile lane padding of every pipelined
    block (the (TILE_B, 32) obs block really costs 512 B/row in VMEM, not 128).
    """
    cap = _vmem_capacity_bytes()
    pad128 = lambda n: _round_up(n, 128)

    per_row = (2 * pad128(obs_dim) * obs_itemsize        # obs stream, 2 buffers
               + 2 * pad128(action_dim) * act_itemsize   # action stream, 2 buffers
               + 2 * 8 * 4                               # (1, TILE_B) f32 out, 2 buffers
               + _round_up(obs_dim, 8) * 4               # transposed obs copy in dot_general
               + 8 * 8 * 4)                              # misc f32 temporaries (e, t, act^T, ...)
    if obs_itemsize < 4:
        per_row += pad128(obs_dim) * 4                   # in-kernel f32 upcast copy
    if act_itemsize < 4:
        per_row += pad128(action_dim) * 4

    if tile_b is None:
        budget = int(cap * 0.65)                         # headroom for Mosaic scratch
        tile_b = 128
        while tile_b < (1 << 16) and 2 * tile_b * per_row <= budget:
            tile_b *= 2
        # v7x megacore: keep >= 2 grid steps when the batch allows it so both
        # TensorCores get work (harmless on single-core v5e/v6e).
        while tile_b > 1024 and pl.cdiv(batch, tile_b) < 2:
            tile_b //= 2
    else:
        tile_b = max(128, _round_up(int(tile_b), 128))

    vmem_limit = min(cap - (8 << 20), tile_b * per_row + (24 << 20))
    return tile_b, int(vmem_limit)


# --------------------------------------------------------------------------- #
# Wrapper
# --------------------------------------------------------------------------- #
def qfunction_forward(obs, action, w_enc, w_head_as, b_head, *,
                      tau: float = 1.0, tile_b: int | None = None):
    """Pallas-based QFunction forward ('vanilla' softmax branch).

    obs:       (B, obs_dim) float32 or bfloat16
    action:    (B, action_dim) float32 or bfloat16
    w_enc:     (state_dim, obs_dim) float32     -- encoder.weight (native layout)
    w_head_as: (action_dim, state_dim) float32  -- head.weight reshaped action-major
    b_head:    (1, 1) float32
    returns:   (B, 1) float32
    """
    obs = jnp.asarray(obs)
    action = jnp.asarray(action)
    w_enc = jnp.asarray(w_enc, jnp.float32)
    w_head_as = jnp.asarray(w_head_as, jnp.float32)
    b_head = jnp.asarray(b_head, jnp.float32).reshape(1, 1)

    B, obs_dim = obs.shape
    action_dim = action.shape[1]
    state_dim = w_enc.shape[0]
    assert action.shape[0] == B
    # kron flatten order is action-major: phi[b, a*S + s] = action[b, a] * enc[b, s],
    # so head.weight (1, A*S) must be reshaped row-major to (A, S).
    assert w_head_as.shape == (action_dim, state_dim)

    tile_b, vmem_limit = _plan_tiling(
        B, obs_dim, action_dim, obs.dtype.itemsize, action.dtype.itemsize,
        tile_b=tile_b)
    grid = (pl.cdiv(B, tile_b),)

    cost = pl.CostEstimate(
        flops=2 * B * state_dim * (obs_dim + action_dim + 1),
        transcendentals=B * state_dim,
        bytes_accessed=(obs.size * obs.dtype.itemsize
                        + action.size * action.dtype.itemsize
                        + 4 * (w_enc.size + w_head_as.size + 1)
                        + 4 * B))

    out = pl.pallas_call(
        functools.partial(_qfunction_kernel, tau=float(tau)),
        out_shape=jax.ShapeDtypeStruct((1, B), jnp.float32),
        grid=grid,
        in_specs=[
            pl.BlockSpec((tile_b, obs_dim), lambda i: (i, 0)),        # obs tile
            pl.BlockSpec((tile_b, action_dim), lambda i: (i, 0)),     # action tile
            pl.BlockSpec((state_dim, obs_dim), lambda i: (0, 0)),     # W_enc (const)
            pl.BlockSpec((action_dim, state_dim), lambda i: (0, 0)),  # W_head (const)
            pl.BlockSpec(memory_space=pltpu.MemorySpace.SMEM),        # bias scalar
        ],
        out_specs=pl.BlockSpec((1, tile_b), lambda i: (0, i)),
        compiler_params=pltpu.CompilerParams(
            dimension_semantics=("parallel",),
            vmem_limit_bytes=vmem_limit),
        cost_estimate=cost,
    )(obs, action, w_enc, w_head_as, b_head)

    return out.reshape(B, 1)


# --------------------------------------------------------------------------- #
# Reference + demo
# --------------------------------------------------------------------------- #
def _orthogonal(key, out_features, in_features, gain=1.0):
    """Deterministic orthogonal init matching nn.init.orthogonal_ semantics
    (rows orthonormal when out_features <= in_features)."""
    a = jax.random.normal(key, (max(out_features, in_features),
                                min(out_features, in_features)),
                          dtype=jnp.float32)
    q, r = jnp.linalg.qr(a)
    q = q * jnp.sign(jnp.diagonal(r))[None, :]
    w = q.T if out_features < in_features else q
    return gain * w[:out_features, :in_features]


def _reference_forward(obs, action, w_enc, w_head_as, b_head, tau):
    enc = obs.astype(jnp.float32) @ w_enc.T
    enc = jax.nn.softmax(enc / tau, axis=-1)
    phi = (action.astype(jnp.float32)[:, :, None] * enc[:, None, :]
           ).reshape(obs.shape[0], -1)
    w_head_flat = w_head_as.reshape(1, -1)
    return phi @ w_head_flat.T + b_head[0, 0]


if __name__ == "__main__":
    OBS_DIM, ACTION_DIM, STATE_DIM, TAU = 32, 4, 3, 1.0

    key = jax.random.PRNGKey(0)
    k_data, k_enc, k_head = jax.random.split(key, 3)

    # Parameters mimicking weight_init:
    #   encoder: Linear(obs_dim, state_dim, bias=False), orthogonal weight
    #   head:    Linear(state_dim*action_dim, 1), orthogonal weight, zero bias
    w_enc = _orthogonal(k_enc, STATE_DIM, OBS_DIM)                  # (S, obs_dim)
    w_head = _orthogonal(k_head, 1, ACTION_DIM * STATE_DIM)         # (1, A*S)
    w_head_as = w_head.reshape(ACTION_DIM, STATE_DIM)               # (A, S), action-major
    b_head = jnp.zeros((1, 1), dtype=jnp.float32)

    # Small canonical case (B=8) plus a ragged multi-block case (B=2500,
    # exercising the partial last block and >= 2 grid steps).
    for B in (8, 2500):
        k_obs, k_act = jax.random.split(jax.random.fold_in(k_data, B))
        obs = jax.random.normal(k_obs, (B, OBS_DIM), dtype=jnp.float32)
        action = jax.random.normal(k_act, (B, ACTION_DIM), dtype=jnp.float32)

        q = qfunction_forward(obs, action, w_enc, w_head_as, b_head, tau=TAU)
        q = jax.block_until_ready(q)

        q_ref = _reference_forward(obs, action, w_enc, w_head_as, b_head, TAU)
        assert q.shape == (B, 1)
        assert jnp.allclose(q, q_ref, atol=1e-5, rtol=1e-5), (
            B, float(jnp.max(jnp.abs(q - q_ref))))

    print("KERNEL_OK")
</pallas_src>

<mosaic_0001>
module attributes {stable_mosaic.version = 11 : i64} {
  func.func @_qfunction_kernel(%arg0: i32, %arg1: memref<1024x32xf32, #tpu.memory_space<vmem>>, %arg2: memref<1024x4xf32, #tpu.memory_space<vmem>>, %arg3: memref<3x32xf32, #tpu.memory_space<vmem>>, %arg4: memref<4x3xf32, #tpu.memory_space<vmem>>, %arg5: memref<1x1xf32, #tpu.memory_space<smem>>, %arg6: memref<1x1024xf32, #tpu.memory_space<vmem>>) attributes {dimension_semantics = [#tpu.dimension_semantics<parallel>], iteration_bounds = array<i64: 1>, scalar_prefetch = 0 : i64, scratch_operands = 0 : i64, tpu.core_type = #tpu.core_type<tc>, window_params = [{transform_indices = @transform_0, window_bounds = array<i64: 1024, 32>}, {transform_indices = @transform_1, window_bounds = array<i64: 1024, 4>}, {pipeline_mode = #tpu.pipeline_mode<synchronous>, transform_indices = @transform_2, window_bounds = array<i64: 3, 32>}, {pipeline_mode = #tpu.pipeline_mode<synchronous>, transform_indices = @transform_3, window_bounds = array<i64: 4, 3>}, {transform_indices = @transform_4, window_bounds = array<i64: 1, 1>}, {transform_indices = @transform_5, window_bounds = array<i64: 1, 1024>}]} {
    %c0 = arith.constant 0 : index
    %c0_0 = arith.constant 0 : index
    %0 = vector.load %arg1[%c0, %c0_0] : memref<1024x32xf32, #tpu.memory_space<vmem>>, vector<1024x32xf32>
    %c0_1 = arith.constant 0 : index
    %c0_2 = arith.constant 0 : index
    %1 = vector.load %arg3[%c0_1, %c0_2] : memref<3x32xf32, #tpu.memory_space<vmem>>, vector<3x32xf32>
    %cst = arith.constant dense<0.000000e+00> : vector<3x1024xf32>
    %2 = tpu.matmul %1, %0, %cst {dimension_numbers = #tpu.dot_dimension_numbers<[1], [1], [0], [0], [0, 0, 1, 0], [], []>} : vector<3x32xf32>, vector<1024x32xf32>, vector<3x1024xf32> -> vector<3x1024xf32>
    %cst_3 = arith.constant 1.000000e+00 : f32
    %3 = vector.broadcast %cst_3 : f32 to vector<3x1024xf32>
    %4 = arith.mulf %2, %3 : vector<3x1024xf32>
    %cst_4 = arith.constant dense<0xFF800000> : vector<1024xf32>
    %5 = vector.multi_reduction <maximumf>, %4, %cst_4 [0] : vector<3x1024xf32> to vector<1024xf32>
    %6 = vector.shape_cast %5 : vector<1024xf32> to vector<1x1024xf32>
    %7 = vector.broadcast %6 : vector<1x1024xf32> to vector<3x1024xf32>
    %8 = arith.subf %4, %7 : vector<3x1024xf32>
    %9 = math.exp %8 : vector<3x1024xf32>
    %cst_5 = arith.constant dense<0.000000e+00> : vector<1024xf32>
    %10 = vector.multi_reduction <add>, %9, %cst_5 [0] : vector<3x1024xf32> to vector<1024xf32>
    %11 = vector.shape_cast %10 : vector<1024xf32> to vector<1x1024xf32>
    %c0_6 = arith.constant 0 : index
    %c0_7 = arith.constant 0 : index
    %12 = vector.load %arg4[%c0_6, %c0_7] : memref<4x3xf32, #tpu.memory_space<vmem>>, vector<4x3xf32>
    %cst_8 = arith.constant dense<0.000000e+00> : vector<4x1024xf32>
    %13 = tpu.matmul %12, %9, %cst_8 {dimension_numbers = #tpu.dot_dimension_numbers<[1], [0], [0], [1], [0, 0, 1, 1], [], []>} : vector<4x3xf32>, vector<3x1024xf32>, vector<4x1024xf32> -> vector<4x1024xf32>
    %c0_9 = arith.constant 0 : index
    %c0_10 = arith.constant 0 : index
    %14 = vector.load %arg2[%c0_9, %c0_10] : memref<1024x4xf32, #tpu.memory_space<vmem>>, vector<1024x4xf32>
    %15 = tpu.transpose %14, [1, 0] : vector<1024x4xf32> -> vector<4x1024xf32>
    %16 = arith.mulf %15, %13 : vector<4x1024xf32>
    %cst_11 = arith.constant dense<0.000000e+00> : vector<1024xf32>
    %17 = vector.multi_reduction <add>, %16, %cst_11 [0] : vector<4x1024xf32> to vector<1024xf32>
    %18 = vector.shape_cast %17 : vector<1024xf32> to vector<1x1024xf32>
    %19 = arith.divf %18, %11 : vector<1x1024xf32>
    %c0_12 = arith.constant 0 : index
    %c0_13 = arith.constant 0 : index
    %20 = memref.load %arg5[%c0_12, %c0_13] : memref<1x1xf32, #tpu.memory_space<smem>>
    %21 = vector.broadcast %20 : f32 to vector<1x1024xf32>
    %22 = arith.addf %19, %21 : vector<1x1024xf32>
    %c0_14 = arith.constant 0 : index
    %c0_15 = arith.constant 0 : index
    %23 = vector.load %arg6[%c0_14, %c0_15] : memref<1x1024xf32, #tpu.memory_space<vmem>>, vector<1x1024xf32>
    tpu.vector_store %arg6[%c0_14, %c0_15], %22 {strides = array<i32>} : memref<1x1024xf32, #tpu.memory_space<vmem>>, vector<1x1024xf32>,
    return
  }
  func.func @transform_0(%arg0: i32) -> (i32, i32) {
    %c0_i32 = arith.constant 0 : i32
    %c0_i32_0 = arith.constant 0 : i32
    return %arg0, %c0_i32 : i32, i32
  }
  func.func @transform_1(%arg0: i32) -> (i32, i32) {
    %c0_i32 = arith.constant 0 : i32
    %c0_i32_0 = arith.constant 0 : i32
    return %arg0, %c0_i32 : i32, i32
  }
  func.func @transform_2(%arg0: i32) -> (i32, i32) {
    %c0_i32 = arith.constant 0 : i32
    %c0_i32_0 = arith.constant 0 : i32
    %c0_i32_1 = arith.constant 0 : i32
    return %c0_i32, %c0_i32_0 : i32, i32
  }
  func.func @transform_3(%arg0: i32) -> (i32, i32) {
    %c0_i32 = arith.constant 0 : i32
    %c0_i32_0 = arith.constant 0 : i32
    %c0_i32_1 = arith.constant 0 : i32
    return %c0_i32, %c0_i32_0 : i32, i32
  }
  func.func @transform_4(%arg0: i32) -> (i32, i32) {
    %c0_i32 = arith.constant 0 : i32
    %c0_i32_0 = arith.constant 0 : i32
    %c0_i32_1 = arith.constant 0 : i32
    return %c0_i32, %c0_i32_0 : i32, i32
  }
  func.func @transform_5(%arg0: i32) -> (i32, i32) {
    %c0_i32 = arith.constant 0 : i32
    %c0_i32_0 = arith.constant 0 : i32
    return %c0_i32, %arg0 : i32, i32
  }
}

</mosaic_0001>

<llo_original>
// kernel: tpu_custom_call.1
$region0: #{tpu_custom_call.1}
  #allocation0 [shape = 'u32[]', space=smem, size = 0x4, offset = 0x4, fixed_abs, tag = 'smem constant byte address 0x4 - core index']
  #allocation1 [shape = 'u32[144,128]{1,0:T(1,128)}', space=vmem, size = 0x12000, scoped, tag = 'internal scratch']
  #allocation2 [shape = 'f32[1,1]{1,0:T(1,128)S(6)}', space=smem, size = 0x200, scoped, tag = 'scoped memory for tpu_custom_call.1']
  %s0 = inlined_call_operand.vmem [shape: f32[8,32], index: 0, kind: input, shape index: {}]
  %s1 = inlined_call_operand.vmem [shape: f32[8,4], index: 1, kind: input, shape index: {}]
  %s2 = inlined_call_operand.vmem [shape: f32[3,32], index: 2, kind: input, shape index: {}]
  %s3 = inlined_call_operand.vmem [shape: f32[4,3], index: 3, kind: input, shape index: {}]
  %s4 = inlined_call_operand.<no memory space> [shape: f32[1,1], index: 4, kind: input, shape index: {}]
  %s5 = inlined_call_operand.hbm [shape: f32[1,8], index: 5, kind: output, shape index: {}]
  %s6 = sld [smem:[#allocation0]]
  $region30: #{tpu_custom_call.1} parent=0
    _
  %s8 = ssub.s32 1, %s6
  %s9 = scalar_select 0, %s8, %s6
  %10 = sst [smem:[#allocation2]] %s4
  $region1: #{tpu_custom_call.1} parent=0
    #allocation3 [shape = 'u8[4096]{0}', space=vmem, size = 0x1000, scoped, tag = 'output window, operand 0, single buffered']
    #allocation4 [shape = 's32[1]{0}', space=sflag, size = 0x4, scoped, tag = 'scoped memory for tpu_custom_call.1']
    %11 = vsyncpa [#allocation4], 0
    // Predicated region
    $region2: #{tpu_custom_call.1} parent=1 // pred_check
      _
    $region3: #{tpu_custom_call.1} parent=1 // pred_check_branch
      %13 = sbr.rel (0) target = $region5
    $region4: #{tpu_custom_call.1} parent=1 // pred_region
      _
    $region5: #{tpu_custom_call.1} parent=1 // pred_fallthru
      _
    // Predicated region
    $region6: #{tpu_custom_call.1} parent=1 // pred_check
      _
    $region7: #{tpu_custom_call.1} parent=1 // pred_check_branch
      %15 = sbr.rel (0) target = $region9
    $region8: #{tpu_custom_call.1} parent=1 // pred_region
      _
    $region9: #{tpu_custom_call.1} parent=1 // pred_fallthru
      _
    // Predicated region
    $region10: #{tpu_custom_call.1} parent=1 // pred_check
      _
    $region11: #{tpu_custom_call.1} parent=1 // pred_check_branch
      %17 = sbr.rel (0) target = $region13
    $region12: #{tpu_custom_call.1} parent=1 // pred_region
      _
    $region13: #{tpu_custom_call.1} parent=1 // pred_fallthru
      _
    // Predicated region
    $region14: #{tpu_custom_call.1} parent=1 // pred_check
      _
    $region15: #{tpu_custom_call.1} parent=1 // pred_check_branch
      %19 = sbr.rel (0) target = $region17
    $region16: #{tpu_custom_call.1} parent=1 // pred_region
      _
    $region17: #{tpu_custom_call.1} parent=1 // pred_fallthru
      _
    // Predicated region
    $region18: #{tpu_custom_call.1} parent=1 // pred_check
      _
    $region19: #{tpu_custom_call.1} parent=1 // pred_check_branch
      %21 = sbr.rel (0) target = $region21
    $region20: #{tpu_custom_call.1} parent=1 // pred_region
      _
    $region21: #{tpu_custom_call.1} parent=1 // pred_fallthru
      _
    %v22 = vld [vmem:[%s0] sm:$0xff]
    %v23 = vld [vmem:[%s0 + $0x8] sm:$0xff]
    %v24 = vld [vmem:[%s0 + $0x10] sm:$0xff]
    %v25 = vld [vmem:[%s0 + $0x18] sm:$0xff]
    %v26 = vld [vmem:[%s0 + $0x20] sm:$0xff]
    %v27 = vld [vmem:[%s0 + $0x28] sm:$0xff]
    %v28 = vld [vmem:[%s0 + $0x30] sm:$0xff]
    %v29 = vld [vmem:[%s0 + $0x38] sm:$0xff]
    %v30 = vld [vmem:[%s0 + $0x40] sm:$0xff]
    %v31 = vld [vmem:[%s0 + $0x48] sm:$0xff]
    %v32 = vld [vmem:[%s0 + $0x50] sm:$0xff]
    %v33 = vld [vmem:[%s0 + $0x58] sm:$0xff]
    %v34 = vld [vmem:[%s0 + $0x60] sm:$0xff]
    %v35 = vld [vmem:[%s0 + $0x68] sm:$0xff]
    %v36 = vld [vmem:[%s0 + $0x70] sm:$0xff]
    %v37 = vld [vmem:[%s0 + $0x78] sm:$0xff]
    %v38 = vld [vmem:[%s0 + $0x80] sm:$0xff]
    %v39 = vld [vmem:[%s0 + $0x88] sm:$0xff]
    %v40 = vld [vmem:[%s0 + $0x90] sm:$0xff]
    %v41 = vld [vmem:[%s0 + $0x98] sm:$0xff]
    %v42 = vld [vmem:[%s0 + $0xa0] sm:$0xff]
    %v43 = vld [vmem:[%s0 + $0xa8] sm:$0xff]
    %v44 = vld [vmem:[%s0 + $0xb0] sm:$0xff]
    %v45 = vld [vmem:[%s0 + $0xb8] sm:$0xff]
    %v46 = vld [vmem:[%s0 + $0xc0] sm:$0xff]
    %v47 = vld [vmem:[%s0 + $0xc8] sm:$0xff]
    %v48 = vld [vmem:[%s0 + $0xd0] sm:$0xff]
    %v49 = vld [vmem:[%s0 + $0xd8] sm:$0xff]
    %v50 = vld [vmem:[%s0 + $0xe0] sm:$0xff]
    %v51 = vld [vmem:[%s0 + $0xe8] sm:$0xff]
    %v52 = vld [vmem:[%s0 + $0xf0] sm:$0xff]
    %v53 = vld [vmem:[%s0 + $0xf8] sm:$0xff]
    %v54 = vld [vmem:[%s0 + $0x100] sm:$0xff]
    %v55 = vld [vmem:[%s0 + $0x108] sm:$0xff]
    %v56 = vld [vmem:[%s0 + $0x110] sm:$0xff]
    %v57 = vld [vmem:[%s0 + $0x118] sm:$0xff]
    %v58 = vld [vmem:[%s0 + $0x120] sm:$0xff]
    %v59 = vld [vmem:[%s0 + $0x128] sm:$0xff]
    %v60 = vld [vmem:[%s0 + $0x130] sm:$0xff]
    %v61 = vld [vmem:[%s0 + $0x138] sm:$0xff]
    %v62 = vld [vmem:[%s0 + $0x140] sm:$0xff]
    %v63 = vld [vmem:[%s0 + $0x148] sm:$0xff]
    %v64 = vld [vmem:[%s0 + $0x150] sm:$0xff]
    %v65 = vld [vmem:[%s0 + $0x158] sm:$0xff]
    %v66 = vld [vmem:[%s0 + $0x160] sm:$0xff]
    %v67 = vld [vmem:[%s0 + $0x168] sm:$0xff]
    %v68 = vld [vmem:[%s0 + $0x170] sm:$0xff]
    %v69 = vld [vmem:[%s0 + $0x178] sm:$0xff]
    %v70 = vld [vmem:[%s0 + $0x180] sm:$0xff]
    %v71 = vld [vmem:[%s0 + $0x188] sm:$0xff]
    %v72 = vld [vmem:[%s0 + $0x190] sm:$0xff]
    %v73 = vld [vmem:[%s0 + $0x198] sm:$0xff]
    %v74 = vld [vmem:[%s0 + $0x1a0] sm:$0xff]
    %v75 = vld [vmem:[%s0 + $0x1a8] sm:$0xff]
    %v76 = vld [vmem:[%s0 + $0x1b0] sm:$0xff]
    %v77 = vld [vmem:[%s0 + $0x1b8] sm:$0xff]
    %v78 = vld [vmem:[%s0 + $0x1c0] sm:$0xff]
    %v79 = vld [vmem:[%s0 + $0x1c8] sm:$0xff]
    %v80 = vld [vmem:[%s0 + $0x1d0] sm:$0xff]
    %v81 = vld [vmem:[%s0 + $0x1d8] sm:$0xff]
    %v82 = vld [vmem:[%s0 + $0x1e0] sm:$0xff]
    %v83 = vld [vmem:[%s0 + $0x1e8] sm:$0xff]
    %v84 = vld [vmem:[%s0 + $0x1f0] sm:$0xff]
    %v85 = vld [vmem:[%s0 + $0x1f8] sm:$0xff]
    %v86 = vld [vmem:[%s0 + $0x200] sm:$0xff]
    %v87 = vld [vmem:[%s0 + $0x208] sm:$0xff]
    %v88 = vld [vmem:[%s0 + $0x210] sm:$0xff]
    %v89 = vld [vmem:[%s0 + $0x218] sm:$0xff]
    %v90 = vld [vmem:[%s0 + $0x220] sm:$0xff]
    %v91 = vld [vmem:[%s0 + $0x228] sm:$0xff]
    %v92 = vld [vmem:[%s0 + $0x230] sm:$0xff]
    %v93 = vld [vmem:[%s0 + $0x238] sm:$0xff]
    %v94 = vld [vmem:[%s0 + $0x240] sm:$0xff]
    %v95 = vld [vmem:[%s0 + $0x248] sm:$0xff]
    %v96 = vld [vmem:[%s0 + $0x250] sm:$0xff]
    %v97 = vld [vmem:[%s0 + $0x258] sm:$0xff]
    %v98 = vld [vmem:[%s0 + $0x260] sm:$0xff]
    %v99 = vld [vmem:[%s0 + $0x268] sm:$0xff]
    %v100 = vld [vmem:[%s0 + $0x270] sm:$0xff]
    %v101 = vld [vmem:[%s0 + $0x278] sm:$0xff]
    %v102 = vld [vmem:[%s0 + $0x280] sm:$0xff]
    %v103 = vld [vmem:[%s0 + $0x288] sm:$0xff]
    %v104 = vld [vmem:[%s0 + $0x290] sm:$0xff]
    %v105 = vld [vmem:[%s0 + $0x298] sm:$0xff]
    %v106 = vld [vmem:[%s0 + $0x2a0] sm:$0xff]
    %v107 = vld [vmem:[%s0 + $0x2a8] sm:$0xff]
    %v108 = vld [vmem:[%s0 + $0x2b0] sm:$0xff]
    %v109 = vld [vmem:[%s0 + $0x2b8] sm:$0xff]
    %v110 = vld [vmem:[%s0 + $0x2c0] sm:$0xff]
    %v111 = vld [vmem:[%s0 + $0x2c8] sm:$0xff]
    %v112 = vld [vmem:[%s0 + $0x2d0] sm:$0xff]
    %v113 = vld [vmem:[%s0 + $0x2d8] sm:$0xff]
    %v114 = vld [vmem:[%s0 + $0x2e0] sm:$0xff]
    %v115 = vld [vmem:[%s0 + $0x2e8] sm:$0xff]
    %v116 = vld [vmem:[%s0 + $0x2f0] sm:$0xff]
    %v117 = vld [vmem:[%s0 + $0x2f8] sm:$0xff]
    %v118 = vld [vmem:[%s0 + $0x300] sm:$0xff]
    %v119 = vld [vmem:[%s0 + $0x308] sm:$0xff]
    %v120 = vld [vmem:[%s0 + $0x310] sm:$0xff]
    %v121 = vld [vmem:[%s0 + $0x318] sm:$0xff]
    %v122 = vld [vmem:[%s0 + $0x320] sm:$0xff]
    %v123 = vld [vmem:[%s0 + $0x328] sm:$0xff]
    %v124 = vld [vmem:[%s0 + $0x330] sm:$0xff]
    %v125 = vld [vmem:[%s0 + $0x338] sm:$0xff]
    %v126 = vld [vmem:[%s0 + $0x340] sm:$0xff]
    %v127 = vld [vmem:[%s0 + $0x348] sm:$0xff]
    %v128 = vld [vmem:[%s0 + $0x350] sm:$0xff]
    %v129 = vld [vmem:[%s0 + $0x358] sm:$0xff]
    %v130 = vld [vmem:[%s0 + $0x360] sm:$0xff]
    %v131 = vld [vmem:[%s0 + $0x368] sm:$0xff]
    %v132 = vld [vmem:[%s0 + $0x370] sm:$0xff]
    %v133 = vld [vmem:[%s0 + $0x378] sm:$0xff]
    %v134 = vld [vmem:[%s0 + $0x380] sm:$0xff]
    %v135 = vld [vmem:[%s0 + $0x388] sm:$0xff]
    %v136 = vld [vmem:[%s0 + $0x390] sm:$0xff]
    %v137 = vld [vmem:[%s0 + $0x398] sm:$0xff]
    %v138 = vld [vmem:[%s0 + $0x3a0] sm:$0xff]
    %v139 = vld [vmem:[%s0 + $0x3a8] sm:$0xff]
    %v140 = vld [vmem:[%s0 + $0x3b0] sm:$0xff]
    %v141 = vld [vmem:[%s0 + $0x3b8] sm:$0xff]
    %v142 = vld [vmem:[%s0 + $0x3c0] sm:$0xff]
    %v143 = vld [vmem:[%s0 + $0x3c8] sm:$0xff]
    %v144 = vld [vmem:[%s0 + $0x3d0] sm:$0xff]
    %v145 = vld [vmem:[%s0 + $0x3d8] sm:$0xff]
    %v146 = vld [vmem:[%s0 + $0x3e0] sm:$0xff]
    %v147 = vld [vmem:[%s0 + $0x3e8] sm:$0xff]
    %v148 = vld [vmem:[%s0 + $0x3f0] sm:$0xff]
    %v149 = vld [vmem:[%s0 + $0x3f8] sm:$0xff]
    %v150 = vld [vmem:[%s2] sm:$0x7]
    %vm151 = vcmask 261120
    %v153 = vsel %vm151, %v150, 0
    %v156 = vsel %vm151, %v22, 0
    %v159 = vsel %vm151, %v23, 0
    %v162 = vsel %vm151, %v24, 0
    %v165 = vsel %vm151, %v25, 0
    %v168 = vsel %vm151, %v26, 0
    %v171 = vsel %vm151, %v27, 0
    %v174 = vsel %vm151, %v28, 0
    %v177 = vsel %vm151, %v29, 0
    %v180 = vsel %vm151, %v30, 0
    %v183 = vsel %vm151, %v31, 0
    %v186 = vsel %vm151, %v32, 0
    %v189 = vsel %vm151, %v33, 0
    %v192 = vsel %vm151, %v34, 0
    %v195 = vsel %vm151, %v35, 0
    %v198 = vsel %vm151, %v36, 0
    %v201 = vsel %vm151, %v37, 0
    %v204 = vsel %vm151, %v38, 0
    %v207 = vsel %vm151, %v39, 0
    %v210 = vsel %vm151, %v40, 0
    %v213 = vsel %vm151, %v41, 0
    %v216 = vsel %vm151, %v42, 0
    %v219 = vsel %vm151, %v43, 0
    %v222 = vsel %vm151, %v44, 0
    %v225 = vsel %vm151, %v45, 0
    %v228 = vsel %vm151, %v46, 0
    %v231 = vsel %vm151, %v47, 0
    %v234 = vsel %vm151, %v48, 0
    %v237 = vsel %vm151, %v49, 0
    %v240 = vsel %vm151, %v50, 0
    %v243 = vsel %vm151, %v51, 0
    %v246 = vsel %vm151, %v52, 0
    %v249 = vsel %vm151, %v53, 0
    %v252 = vsel %vm151, %v54, 0
    %v255 = vsel %vm151, %v55, 0
    %v258 = vsel %vm151, %v56, 0
    %v261 = vsel %vm151, %v57, 0
    %v264 = vsel %vm151, %v58, 0
    %v267 = vsel %vm151, %v59, 0
    %v270 = vsel %vm151, %v60, 0
    %v273 = vsel %vm151, %v61, 0
    %v276 = vsel %vm151, %v62, 0
    %v279 = vsel %vm151, %v63, 0
    %v282 = vsel %vm151, %v64, 0
    %v285 = vsel %vm151, %v65, 0
    %v288 = vsel %vm151, %v66, 0
    %v291 = vsel %vm151, %v67, 0
    %v294 = vsel %vm151, %v68, 0
    %v297 = vsel %vm151, %v69, 0
    %v300 = vsel %vm151, %v70, 0
    %v303 = vsel %vm151, %v71, 0
    %v306 = vsel %vm151, %v72, 0
    %v309 = vsel %vm151, %v73, 0
    %v312 = vsel %vm151, %v74, 0
    %v315 = vsel %vm151, %v75, 0
    %v318 = vsel %vm151, %v76, 0
    %v321 = vsel %vm151, %v77, 0
    %v324 = vsel %vm151, %v78, 0
    %v327 = vsel %vm151, %v79, 0
    %v330 = vsel %vm151, %v80, 0
    %v333 = vsel %vm151, %v81, 0
    %v336 = vsel %vm151, %v82, 0
    %v339 = vsel %vm151, %v83, 0
    %v342 = vsel %vm151, %v84, 0
    %v345 = vsel %vm151, %v85, 0
    %v348 = vsel %vm151, %v86, 0
    %v351 = vsel %vm151, %v87, 0
    %v354 = vsel %vm151, %v88, 0
    %v357 = vsel %vm151, %v89, 0
    %v360 = vsel %vm151, %v90, 0
    %v363 = vsel %vm151, %v91, 0
    %v366 = vsel %vm151, %v92, 0
    %v369 = vsel %vm151, %v93, 0
    %v372 = vsel %vm151, %v94, 0
    %v375 = vsel %vm151, %v95, 0
    %v378 = vsel %vm151, %v96, 0
    %v381 = vsel %vm151, %v97, 0
    %v384 = vsel %vm151, %v98, 0
    %v387 = vsel %vm151, %v99, 0
    %v390 = vsel %vm151, %v100, 0
    %v393 = vsel %vm151, %v101, 0
    %v396 = vsel %vm151, %v102, 0
    %v399 = vsel %vm151, %v103, 0
    %v402 = vsel %vm151, %v104, 0
    %v405 = vsel %vm151, %v105, 0
    %v408 = vsel %vm151, %v106, 0
    %v411 = vsel %vm151, %v107, 0
    %v414 = vsel %vm151, %v108, 0
    %v417 = vsel %vm151, %v109, 0
    %v420 = vsel %vm151, %v110, 0
    %v423 = vsel %vm151, %v111, 0
    %v426 = vsel %vm151, %v112, 0
    %v429 = vsel %vm151, %v113, 0
    %v432 = vsel %vm151, %v114, 0
    %v435 = vsel %vm151, %v115, 0
    %v438 = vsel %vm151, %v116, 0
    %v441 = vsel %vm151, %v117, 0
    %v444 = vsel %vm151, %v118, 0
    %v447 = vsel %vm151, %v119, 0
    %v450 = vsel %vm151, %v120, 0
    %v453 = vsel %vm151, %v121, 0
    %v456 = vsel %vm151, %v122, 0
    %v459 = vsel %vm151, %v123, 0
    %v462 = vsel %vm151, %v124, 0
    %v465 = vsel %vm151, %v125, 0
    %v468 = vsel %vm151, %v126, 0
    %v471 = vsel %vm151, %v127, 0
    %v474 = vsel %vm151, %v128, 0
    %v477 = vsel %vm151, %v129, 0
    %v480 = vsel %vm151, %v130, 0
    %v483 = vsel %vm151, %v131, 0
    %v486 = vsel %vm151, %v132, 0
    %v489 = vsel %vm151, %v133, 0
    %v492 = vsel %vm151, %v134, 0
    %v495 = vsel %vm151, %v135, 0
    %v498 = vsel %vm151, %v136, 0
    %v501 = vsel %vm151, %v137, 0
    %v504 = vsel %vm151, %v138, 0
    %v507 = vsel %vm151, %v139, 0
    %v510 = vsel %vm151, %v140, 0
    %v513 = vsel %vm151, %v141, 0
    %v516 = vsel %vm151, %v142, 0
    %v519 = vsel %vm151, %v143, 0
    %v522 = vsel %vm151, %v144, 0
    %v525 = vsel %vm151, %v145, 0
    %v528 = vsel %vm151, %v146, 0
    %v531 = vsel %vm151, %v147, 0
    %v534 = vsel %vm151, %v148, 0
    %v537 = vsel %vm151, %v149, 0
    %539 = vmatprep.subr.mxu0 0.0
    %540 = vmatpush1.xpose.msra.mxu0 %v156
    %541 = vmatprep.subr.mxu0 0.0
    %542 = vmatpush1.xpose.msra.mxu0 %v159
    %543 = vmatprep.subr.mxu0 0.0
    %544 = vmatpush1.xpose.msra.mxu0 %v162
    %545 = vmatprep.subr.mxu0 0.0
    %546 = vmatpush1.xpose.msra.mxu0 %v165
    %547 = vmatprep.subr.mxu0 0.0
    %548 = vmatpush1.xpose.msra.mxu0 %v168
    %549 = vmatprep.subr.mxu0 0.0
    %550 = vmatpush1.xpose.msra.mxu0 %v171
    %551 = vmatprep.subr.mxu0 0.0
    %552 = vmatpush1.xpose.msra.mxu0 %v174
    %553 = vmatprep.subr.mxu0 0.0
    %554 = vmatpush1.xpose.msra.mxu0 %v177
    %555 = vmatprep.subr.mxu0 0.0
    %556 = vmatpush1.xpose.msra.mxu0 %v180
    %557 = vmatprep.subr.mxu0 0.0
    %558 = vmatpush1.xpose.msra.mxu0 %v183
    %559 = vmatprep.subr.mxu0 0.0
    %560 = vmatpush1.xpose.msra.mxu0 %v186
    %561 = vmatprep.subr.mxu0 0.0
    %562 = vmatpush1.xpose.msra.mxu0 %v189
    %563 = vmatprep.subr.mxu0 0.0
    %564 = vmatpush1.xpose.msra.mxu0 %v192
    %565 = vmatprep.subr.mxu0 0.0
    %566 = vmatpush1.xpose.msra.mxu0 %v195
    %567 = vmatprep.subr.mxu0 0.0
    %568 = vmatpush1.xpose.msra.mxu0 %v198
    %569 = vmatprep.subr.mxu0 0.0
    %570 = vmatpush1.xpose.msra.mxu0 %v201
    %571 = vmatprep.subr.mxu0 0.0
    %572 = vmatpush1.xpose.msra.mxu0 %v204
    %573 = vmatprep.subr.mxu0 0.0
    %574 = vmatpush1.xpose.msra.mxu0 %v207
    %575 = vmatprep.subr.mxu0 0.0
    %576 = vmatpush1.xpose.msra.mxu0 %v210
    %577 = vmatprep.subr.mxu0 0.0
    %578 = vmatpush1.xpose.msra.mxu0 %v213
    %579 = vmatprep.subr.mxu0 0.0
    %580 = vmatpush1.xpose.msra.mxu0 %v216
    %581 = vmatprep.subr.mxu0 0.0
    %582 = vmatpush1.xpose.msra.mxu0 %v219
    %583 = vmatprep.subr.mxu0 0.0
    %584 = vmatpush1.xpose.msra.mxu0 %v222
    %585 = vmatprep.subr.mxu0 0.0
    %586 = vmatpush1.xpose.msra.mxu0 %v225
    %587 = vmatprep.subr.mxu0 0.0
    %588 = vmatpush1.xpose.msra.mxu0 %v228
    %589 = vmatprep.subr.mxu0 0.0
    %590 = vmatpush1.xpose.msra.mxu0 %v231
    %591 = vmatprep.subr.mxu0 0.0
    %592 = vmatpush1.xpose.msra.mxu0 %v234
    %593 = vmatprep.subr.mxu0 0.0
    %594 = vmatpush1.xpose.msra.mxu0 %v237
    %595 = vmatprep.subr.mxu0 0.0
    %596 = vmatpush1.xpose.msra.mxu0 %v240
    %597 = vmatprep.subr.mxu0 0.0
    %598 = vmatpush1.xpose.msra.mxu0 %v243
    %599 = vmatprep.subr.mxu0 0.0
    %600 = vmatpush1.xpose.msra.mxu0 %v246
    %601 = vmatprep.subr.mxu0 0.0
    %602 = vmatpush1.xpose.msra.mxu0 %v249
    %603 = vmatprep.mubr.f32.mxu0 0.0
    %604 = vmatmul.mubr.f32.gmra.mrb[0].mxu0 %v153
    %v605 = vpop.f32.mrb[0].mxu0
    %v606 = vadd.f32 0.0, %v605
    %v607 = vpop.f32.mrb[0].mxu0
    %v608 = vadd.f32 0.0, %v607
    %609 = vdwg.mxu0
    %610 = vmatprep.subr.mxu0 0.0
    %611 = vmatpush1.xpose.msra.mxu0 %v252
    %612 = vmatprep.subr.mxu0 0.0
    %613 = vmatpush1.xpose.msra.mxu0 %v255
    %614 = vmatprep.subr.mxu0 0.0
    %615 = vmatpush1.xpose.msra.mxu0 %v258
    %616 = vmatprep.subr.mxu0 0.0
    %617 = vmatpush1.xpose.msra.mxu0 %v261
    %618 = vmatprep.subr.mxu0 0.0
    %619 = vmatpush1.xpose.msra.mxu0 %v264
    %620 = vmatprep.subr.mxu0 0.0
    %621 = vmatpush1.xpose.msra.mxu0 %v267
    %622 = vmatprep.subr.mxu0 0.0
    %623 = vmatpush1.xpose.msra.mxu0 %v270
    %624 = vmatprep.subr.mxu0 0.0
    %625 = vmatpush1.xpose.msra.mxu0 %v273
    %626 = vmatprep.subr.mxu0 0.0
    %627 = vmatpush1.xpose.msra.mxu0 %v276
    %628 = vmatprep.subr.mxu0 0.0
    %629 = vmatpush1.xpose.msra.mxu0 %v279
    %630 = vmatprep.subr.mxu0 0.0
    %631 = vmatpush1.xpose.msra.mxu0 %v282
    %632 = vmatprep.subr.mxu0 0.0
    %633 = vmatpush1.xpose.msra.mxu0 %v285
    %634 = vmatprep.subr.mxu0 0.0
    %635 = vmatpush1.xpose.msra.mxu0 %v288
    %636 = vmatprep.subr.mxu0 0.0
    %637 = vmatpush1.xpose.msra.mxu0 %v291
    %638 = vmatprep.subr.mxu0 0.0
    %639 = vmatpush1.xpose.msra.mxu0 %v294
    %640 = vmatprep.subr.mxu0 0.0
    %641 = vmatpush1.xpose.msra.mxu0 %v297
    %642 = vmatprep.subr.mxu0 0.0
    %643 = vmatpush1.xpose.msra.mxu0 %v300
    %644 = vmatprep.subr.mxu0 0.0
    %645 = vmatpush1.xpose.msra.mxu0 %v303
    %646 = vmatprep.subr.mxu0 0.0
    %647 = vmatpush1.xpose.msra.mxu0 %v306
    %648 = vmatprep.subr.mxu0 0.0
    %649 = vmatpush1.xpose.msra.mxu0 %v309
    %650 = vmatprep.subr.mxu0 0.0
    %651 = vmatpush1.xpose.msra.mxu0 %v312
    %652 = vmatprep.subr.mxu0 0.0
    %653 = vmatpush1.xpose.msra.mxu0 %v315
    %654 = vmatprep.subr.mxu0 0.0
    %655 = vmatpush1.xpose.msra.mxu0 %v318
    %656 = vmatprep.subr.mxu0 0.0
    %657 = vmatpush1.xpose.msra.mxu0 %v321
    %658 = vmatprep.subr.mxu0 0.0
    %659 = vmatpush1.xpose.msra.mxu0 %v324
    %660 = vmatprep.subr.mxu0 0.0
    %661 = vmatpush1.xpose.msra.mxu0 %v327
    %662 = vmatprep.subr.mxu0 0.0
    %663 = vmatpush1.xpose.msra.mxu0 %v330
    %664 = vmatprep.subr.mxu0 0.0
    %665 = vmatpush1.xpose.msra.mxu0 %v333
    %666 = vmatprep.subr.mxu0 0.0
    %667 = vmatpush1.xpose.msra.mxu0 %v336
    %668 = vmatprep.subr.mxu0 0.0
    %669 = vmatpush1.xpose.msra.mxu0 %v339
    %670 = vmatprep.subr.mxu0 0.0
    %671 = vmatpush1.xpose.msra.mxu0 %v342
    %672 = vmatprep.subr.mxu0 0.0
    %673 = vmatpush1.xpose.msra.mxu0 %v345
    %674 = vmatprep.mubr.f32.mxu0 0.0
    %675 = vmatmul.mubr.f32.gmra.mrb[0].mxu0 %v153
    %v676 = vpop.f32.mrb[0].mxu0
    %v677 = vadd.f32 0.0, %v676
    %v678 = vpop.f32.mrb[0].mxu0
    %v679 = vadd.f32 0.0, %v678
    %680 = vdwg.mxu0
    %681 = vmatprep.subr.mxu0 0.0
    %682 = vmatpush1.xpose.msra.mxu0 %v348
    %683 = vmatprep.subr.mxu0 0.0
    %684 = vmatpush1.xpose.msra.mxu0 %v351
    %685 = vmatprep.subr.mxu0 0.0
    %686 = vmatpush1.xpose.msra.mxu0 %v354
    %687 = vmatprep.subr.mxu0 0.0
    %688 = vmatpush1.xpose.msra.mxu0 %v357
    %689 = vmatprep.subr.mxu0 0.0
    %690 = vmatpush1.xpose.msra.mxu0 %v360
    %691 = vmatprep.subr.mxu0 0.0
    %692 = vmatpush1.xpose.msra.mxu0 %v363
    %693 = vmatprep.subr.mxu0 0.0
    %694 = vmatpush1.xpose.msra.mxu0 %v366
    %695 = vmatprep.subr.mxu0 0.0
    %696 = vmatpush1.xpose.msra.mxu0 %v369
    %697 = vmatprep.subr.mxu0 0.0
    %698 = vmatpush1.xpose.msra.mxu0 %v372
    %699 = vmatprep.subr.mxu0 0.0
    %700 = vmatpush1.xpose.msra.mxu0 %v375
    %701 = vmatprep.subr.mxu0 0.0
    %702 = vmatpush1.xpose.msra.mxu0 %v378
    %703 = vmatprep.subr.mxu0 0.0
    %704 = vmatpush1.xpose.msra.mxu0 %v381
    %705 = vmatprep.subr.mxu0 0.0
    %706 = vmatpush1.xpose.msra.mxu0 %v384
    %707 = vmatprep.subr.mxu0 0.0
    %708 = vmatpush1.xpose.msra.mxu0 %v387
    %709 = vmatprep.subr.mxu0 0.0
    %710 = vmatpush1.xpose.msra.mxu0 %v390
    %711 = vmatprep.subr.mxu0 0.0
    %712 = vmatpush1.xpose.msra.mxu0 %v393
    %713 = vmatprep.subr.mxu0 0.0
    %714 = vmatpush1.xpose.msra.mxu0 %v396
    %715 = vmatprep.subr.mxu0 0.0
    %716 = vmatpush1.xpose.msra.mxu0 %v399
    %717 = vmatprep.subr.mxu0 0.0
    %718 = vmatpush1.xpose.msra.mxu0 %v402
    %719 = vmatprep.subr.mxu0 0.0
    %720 = vmatpush1.xpose.msra.mxu0 %v405
    %721 = vmatprep.subr.mxu0 0.0
    %722 = vmatpush1.xpose.msra.mxu0 %v408
    %723 = vmatprep.subr.mxu0 0.0
    %724 = vmatpush1.xpose.msra.mxu0 %v411
    %725 = vmatprep.subr.mxu0 0.0
    %726 = vmatpush1.xpose.msra.mxu0 %v414
    %727 = vmatprep.subr.mxu0 0.0
    %728 = vmatpush1.xpose.msra.mxu0 %v417
    %729 = vmatprep.subr.mxu0 0.0
    %730 = vmatpush1.xpose.msra.mxu0 %v420
    %731 = vmatprep.subr.mxu0 0.0
    %732 = vmatpush1.xpose.msra.mxu0 %v423
    %733 = vmatprep.subr.mxu0 0.0
    %734 = vmatpush1.xpose.msra.mxu0 %v426
    %735 = vmatprep.subr.mxu0 0.0
    %736 = vmatpush1.xpose.msra.mxu0 %v429
    %737 = vmatprep.subr.mxu0 0.0
    %738 = vmatpush1.xpose.msra.mxu0 %v432
    %739 = vmatprep.subr.mxu0 0.0
    %740 = vmatpush1.xpose.msra.mxu0 %v435
    %741 = vmatprep.subr.mxu0 0.0
    %742 = vmatpush1.xpose.msra.mxu0 %v438
    %743 = vmatprep.subr.mxu0 0.0
    %744 = vmatpush1.xpose.msra.mxu0 %v441
    %745 = vmatprep.mubr.f32.mxu0 0.0
    %746 = vmatmul.mubr.f32.gmra.mrb[0].mxu0 %v153
    %v747 = vpop.f32.mrb[0].mxu0
    %v748 = vadd.f32 0.0, %v747
    %v749 = vpop.f32.mrb[0].mxu0
    %v750 = vadd.f32 0.0, %v749
    %751 = vdwg.mxu0
    %752 = vmatprep.subr.mxu0 0.0
    %753 = vmatpush1.xpose.msra.mxu0 %v444
    %754 = vmatprep.subr.mxu0 0.0
    %755 = vmatpush1.xpose.msra.mxu0 %v447
    %756 = vmatprep.subr.mxu0 0.0
    %757 = vmatpush1.xpose.msra.mxu0 %v450
    %758 = vmatprep.subr.mxu0 0.0
    %759 = vmatpush1.xpose.msra.mxu0 %v453
    %760 = vmatprep.subr.mxu0 0.0
    %761 = vmatpush1.xpose.msra.mxu0 %v456
    %762 = vmatprep.subr.mxu0 0.0
    %763 = vmatpush1.xpose.msra.mxu0 %v459
    %764 = vmatprep.subr.mxu0 0.0
    %765 = vmatpush1.xpose.msra.mxu0 %v462
    %766 = vmatprep.subr.mxu0 0.0
    %767 = vmatpush1.xpose.msra.mxu0 %v465
    %768 = vmatprep.subr.mxu0 0.0
    %769 = vmatpush1.xpose.msra.mxu0 %v468
    %770 = vmatprep.subr.mxu0 0.0
    %771 = vmatpush1.xpose.msra.mxu0 %v471
    %772 = vmatprep.subr.mxu0 0.0
    %773 = vmatpush1.xpose.msra.mxu0 %v474
    %774 = vmatprep.subr.mxu0 0.0
    %775 = vmatpush1.xpose.msra.mxu0 %v477
    %776 = vmatprep.subr.mxu0 0.0
    %777 = vmatpush1.xpose.msra.mxu0 %v480
    %778 = vmatprep.subr.mxu0 0.0
    %779 = vmatpush1.xpose.msra.mxu0 %v483
    %780 = vmatprep.subr.mxu0 0.0
    %781 = vmatpush1.xpose.msra.mxu0 %v486
    %782 = vmatprep.subr.mxu0 0.0
    %783 = vmatpush1.xpose.msra.mxu0 %v489
    %784 = vmatprep.subr.mxu0 0.0
    %785 = vmatpush1.xpose.msra.mxu0 %v492
    %786 = vmatprep.subr.mxu0 0.0
    %787 = vmatpush1.xpose.msra.mxu0 %v495
    %788 = vmatprep.subr.mxu0 0.0
    %789 = vmatpush1.xpose.msra.mxu0 %v498
    %790 = vmatprep.subr.mxu0 0.0
    %791 = vmatpush1.xpose.msra.mxu0 %v501
    %792 = vmatprep.subr.mxu0 0.0
    %793 = vmatpush1.xpose.msra.mxu0 %v504
    %794 = vmatprep.subr.mxu0 0.0
    %795 = vmatpush1.xpose.msra.mxu0 %v507
    %796 = vmatprep.subr.mxu0 0.0
    %797 = vmatpush1.xpose.msra.mxu0 %v510
    %798 = vmatprep.subr.mxu0 0.0
    %799 = vmatpush1.xpose.msra.mxu0 %v513
    %800 = vmatprep.subr.mxu0 0.0
    %801 = vmatpush1.xpose.msra.mxu0 %v516
    %802 = vmatprep.subr.mxu0 0.0
    %803 = vmatpush1.xpose.msra.mxu0 %v519
    %804 = vmatprep.subr.mxu0 0.0
    %805 = vmatpush1.xpose.msra.mxu0 %v522
    %806 = vmatprep.subr.mxu0 0.0
    %807 = vmatpush1.xpose.msra.mxu0 %v525
    %808 = vmatprep.subr.mxu0 0.0
    %809 = vmatpush1.xpose.msra.mxu0 %v528
    %810 = vmatprep.subr.mxu0 0.0
    %811 = vmatpush1.xpose.msra.mxu0 %v531
    %812 = vmatprep.subr.mxu0 0.0
    %813 = vmatpush1.xpose.msra.mxu0 %v534
    %814 = vmatprep.subr.mxu0 0.0
    %815 = vmatpush1.xpose.msra.mxu0 %v537
    %816 = vmatprep.mubr.f32.mxu0 0.0
    %817 = vmatmul.mubr.f32.gmra.mrb[0].mxu0 %v153
    %v818 = vpop.f32.mrb[0].mxu0
    %v819 = vadd.f32 0.0, %v818
    %v820 = vpop.f32.mrb[0].mxu0
    %v821 = vadd.f32 0.0, %v820
    %822 = vdwg.mxu0
    %vm823 = vcmask 1042432
    %v824 = vsel %vm823, %v606, -inf
    %v825 = vrot.slane %v824, 4
    %v826 = vmax.f32 %v824, %v825
    %v827 = vrot.slane %v826, 2
    %v828 = vmax.f32 %v826, %v827
    %v829 = vrot.slane %v828, 1
    %v830 = vmax.f32 %v828, %v829
    %v831 = vsel %vm823, %v608, -inf
    %v832 = vrot.slane %v831, 4
    %v833 = vmax.f32 %v831, %v832
    %v834 = vrot.slane %v833, 2
    %v835 = vmax.f32 %v833, %v834
    %v836 = vrot.slane %v835, 1
    %v837 = vmax.f32 %v835, %v836
    %v838 = vsel %vm823, %v677, -inf
    %v839 = vrot.slane %v838, 4
    %v840 = vmax.f32 %v838, %v839
    %v841 = vrot.slane %v840, 2
    %v842 = vmax.f32 %v840, %v841
    %v843 = vrot.slane %v842, 1
    %v844 = vmax.f32 %v842, %v843
    %v845 = vsel %vm823, %v679, -inf
    %v846 = vrot.slane %v845, 4
    %v847 = vmax.f32 %v845, %v846
    %v848 = vrot.slane %v847, 2
    %v849 = vmax.f32 %v847, %v848
    %v850 = vrot.slane %v849, 1
    %v851 = vmax.f32 %v849, %v850
    %v852 = vsel %vm823, %v748, -inf
    %v853 = vrot.slane %v852, 4
    %v854 = vmax.f32 %v852, %v853
    %v855 = vrot.slane %v854, 2
    %v856 = vmax.f32 %v854, %v855
    %v857 = vrot.slane %v856, 1
    %v858 = vmax.f32 %v856, %v857
    %v859 = vsel %vm823, %v750, -inf
    %v860 = vrot.slane %v859, 4
    %v861 = vmax.f32 %v859, %v860
    %v862 = vrot.slane %v861, 2
    %v863 = vmax.f32 %v861, %v862
    %v864 = vrot.slane %v863, 1
    %v865 = vmax.f32 %v863, %v864
    %v866 = vsel %vm823, %v819, -inf
    %v867 = vrot.slane %v866, 4
    %v868 = vmax.f32 %v866, %v867
    %v869 = vrot.slane %v868, 2
    %v870 = vmax.f32 %v868, %v869
    %v871 = vrot.slane %v870, 1
    %v872 = vmax.f32 %v870, %v871
    %v873 = vsel %vm823, %v821, -inf
    %v874 = vrot.slane %v873, 4
    %v875 = vmax.f32 %v873, %v874
    %v876 = vrot.slane %v875, 2
    %v877 = vmax.f32 %v875, %v876
    %v878 = vrot.slane %v877, 1
    %v879 = vmax.f32 %v877, %v878
    %v880 = vsub.f32 %v606, %v830
    %v881 = vsub.f32 %v608, %v837
    %v882 = vsub.f32 %v677, %v844
    %v883 = vsub.f32 %v679, %v851
    %v884 = vsub.f32 %v748, %v858
    %v885 = vsub.f32 %v750, %v865
    %v886 = vsub.f32 %v819, %v872
    %v887 = vsub.f32 %v821, %v879
    %v888 = vmul.f32 %v880, 1.442695
    %v889 = vpow.pop %v888
    %v890 = vmul.f32 %v881, 1.442695
    %v891 = vpow.pop %v890
    %v892 = vmul.f32 %v882, 1.442695
    %v893 = vpow.pop %v892
    %v894 = vmul.f32 %v883, 1.442695
    %v895 = vpow.pop %v894
    %v896 = vmul.f32 %v884, 1.442695
    %v897 = vpow.pop %v896
    %v898 = vmul.f32 %v885, 1.442695
    %v899 = vpow.pop %v898
    %v900 = vmul.f32 %v886, 1.442695
    %v901 = vpow.pop %v900
    %v902 = vmul.f32 %v887, 1.442695
    %v903 = vpow.pop %v902
    %v904 = vsel %vm823, %v889, 0.0
    %v905 = vrot.slane %v904, 4
    %v906 = vadd.f32 %v904, %v905
    %v907 = vrot.slane %v906, 2
    %v908 = vadd.f32 %v906, %v907
    %v909 = vrot.slane %v908, 1
    %v910 = vadd.f32 %v908, %v909
    %v911 = vsel %vm823, %v891, 0.0
    %v912 = vrot.slane %v911, 4
    %v913 = vadd.f32 %v911, %v912
    %v914 = vrot.slane %v913, 2
    %v915 = vadd.f32 %v913, %v914
    %v916 = vrot.slane %v915, 1
    %v917 = vadd.f32 %v915, %v916
    %v918 = vsel %vm823, %v893, 0.0
    %v919 = vrot.slane %v918, 4
    %v920 = vadd.f32 %v918, %v919
    %v921 = vrot.slane %v920, 2
    %v922 = vadd.f32 %v920, %v921
    %v923 = vrot.slane %v922, 1
    %v924 = vadd.f32 %v922, %v923
    %v925 = vsel %vm823, %v895, 0.0
    %v926 = vrot.slane %v925, 4
    %v927 = vadd.f32 %v925, %v926
    %v928 = vrot.slane %v927, 2
    %v929 = vadd.f32 %v927, %v928
    %v930 = vrot.slane %v929, 1
    %v931 = vadd.f32 %v929, %v930
    %v932 = vsel %vm823, %v897, 0.0
    %v933 = vrot.slane %v932, 4
    %v934 = vadd.f32 %v932, %v933
    %v935 = vrot.slane %v934, 2
    %v936 = vadd.f32 %v934, %v935
    %v937 = vrot.slane %v936, 1
    %v938 = vadd.f32 %v936, %v937
    %v939 = vsel %vm823, %v899, 0.0
    %v940 = vrot.slane %v939, 4
    %v941 = vadd.f32 %v939, %v940
    %v942 = vrot.slane %v941, 2
    %v943 = vadd.f32 %v941, %v942
    %v944 = vrot.slane %v943, 1
    %v945 = vadd.f32 %v943, %v944
    %v946 = vsel %vm823, %v901, 0.0
    %v947 = vrot.slane %v946, 4
    %v948 = vadd.f32 %v946, %v947
    %v949 = vrot.slane %v948, 2
    %v950 = vadd.f32 %v948, %v949
    %v951 = vrot.slane %v950, 1
    %v952 = vadd.f32 %v950, %v951
    %v953 = vsel %vm823, %v903, 0.0
    %v954 = vrot.slane %v953, 4
    %v955 = vadd.f32 %v953, %v954
    %v956 = vrot.slane %v955, 2
    %v957 = vadd.f32 %v955, %v956
    %v958 = vrot.slane %v957, 1
    %v959 = vadd.f32 %v957, %v958
    %v960 = vld [vmem:[%s3] sm:$0xf]
    %vm961 = vcmask 23552
    %v963 = vsel %vm961, %v960, 0
    %v966 = vsel %vm823, %v889, 0
    %v969 = vsel %vm823, %v891, 0
    %v972 = vsel %vm823, %v893, 0
    %v975 = vsel %vm823, %v895, 0
    %v978 = vsel %vm823, %v897, 0
    %v981 = vsel %vm823, %v899, 0
    %v984 = vsel %vm823, %v901, 0
    %v987 = vsel %vm823, %v903, 0
    %989 = vmatprep.subr.mxu0 %v969
    %990 = vmatpush1.msra.mxu0 %v966
    %991 = vmatprep.subr.mxu0 0.0
    %992 = vmatpush1.msra.mxu0 0.0
    %993 = vmatprep.subr.mxu0 0.0
    %994 = vmatpush1.msra.mxu0 0.0
    %995 = vmatprep.subr.mxu0 0.0
    %996 = vmatpush1.msra.mxu0 0.0
    %997 = vmatprep.subr.mxu0 0.0
    %998 = vmatpush1.msra.mxu0 0.0
    %999 = vmatprep.subr.mxu0 0.0
    %1000 = vmatpush1.msra.mxu0 0.0
    %1001 = vmatprep.subr.mxu0 0.0
    %1002 = vmatpush1.msra.mxu0 0.0
    %1003 = vmatprep.subr.mxu0 0.0
    %1004 = vmatpush1.msra.mxu0 0.0
    %1005 = vmatprep.subr.mxu0 0.0
    %1006 = vmatpush1.msra.mxu0 0.0
    %1007 = vmatprep.subr.mxu0 0.0
    %1008 = vmatpush1.msra.mxu0 0.0
    %1009 = vmatprep.subr.mxu0 0.0
    %1010 = vmatpush1.msra.mxu0 0.0
    %1011 = vmatprep.subr.mxu0 0.0
    %1012 = vmatpush1.msra.mxu0 0.0
    %1013 = vmatprep.subr.mxu0 0.0
    %1014 = vmatpush1.msra.mxu0 0.0
    %1015 = vmatprep.subr.mxu0 0.0
    %1016 = vmatpush1.msra.mxu0 0.0
    %1017 = vmatprep.subr.mxu0 0.0
    %1018 = vmatpush1.msra.mxu0 0.0
    %1019 = vmatprep.subr.mxu0 0.0
    %1020 = vmatpush1.msra.mxu0 0.0
    %1021 = vmatprep.subr.mxu0 0.0
    %1022 = vmatpush1.msra.mxu0 0.0
    %1023 = vmatprep.subr.mxu0 0.0
    %1024 = vmatpush1.msra.mxu0 0.0
    %1025 = vmatprep.subr.mxu0 0.0
    %1026 = vmatpush1.msra.mxu0 0.0
    %1027 = vmatprep.subr.mxu0 0.0
    %1028 = vmatpush1.msra.mxu0 0.0
    %1029 = vmatprep.subr.mxu0 0.0
    %1030 = vmatpush1.msra.mxu0 0.0
    %1031 = vmatprep.subr.mxu0 0.0
    %1032 = vmatpush1.msra.mxu0 0.0
    %1033 = vmatprep.subr.mxu0 0.0
    %1034 = vmatpush1.msra.mxu0 0.0
    %1035 = vmatprep.subr.mxu0 0.0
    %1036 = vmatpush1.msra.mxu0 0.0
    %1037 = vmatprep.subr.mxu0 0.0
    %1038 = vmatpush1.msra.mxu0 0.0
    %1039 = vmatprep.subr.mxu0 0.0
    %1040 = vmatpush1.msra.mxu0 0.0
    %1041 = vmatprep.subr.mxu0 0.0
    %1042 = vmatpush1.msra.mxu0 0.0
    %1043 = vmatprep.subr.mxu0 0.0
    %1044 = vmatpush1.msra.mxu0 0.0
    %1045 = vmatprep.subr.mxu0 0.0
    %1046 = vmatpush1.msra.mxu0 0.0
    %1047 = vmatprep.subr.mxu0 0.0
    %1048 = vmatpush1.msra.mxu0 0.0
    %1049 = vmatprep.subr.mxu0 0.0
    %1050 = vmatpush1.msra.mxu0 0.0
    %1051 = vmatprep.subr.mxu0 0.0
    %1052 = vmatpush1.msra.mxu0 0.0
    %1053 = vmatprep.mubr.f32.mxu0 0.0
    %1054 = vmatmul.mubr.f32.gmra.mrb[0].mxu0 %v963
    %v1055 = vpop.f32.mrb[0].mxu0
    %v1056 = vadd.f32 0.0, %v1055
    %v1057 = vpop.f32.mrb[0].mxu0
    %v1058 = vadd.f32 0.0, %v1057
    %1059 = vdwg.mxu0
    %1060 = vmatprep.subr.mxu0 %v975
    %1061 = vmatpush1.msra.mxu0 %v972
    %1062 = vmatprep.subr.mxu0 0.0
    %1063 = vmatpush1.msra.mxu0 0.0
    %1064 = vmatprep.subr.mxu0 0.0
    %1065 = vmatpush1.msra.mxu0 0.0
    %1066 = vmatprep.subr.mxu0 0.0
    %1067 = vmatpush1.msra.mxu0 0.0
    %1068 = vmatprep.subr.mxu0 0.0
    %1069 = vmatpush1.msra.mxu0 0.0
    %1070 = vmatprep.subr.mxu0 0.0
    %1071 = vmatpush1.msra.mxu0 0.0
    %1072 = vmatprep.subr.mxu0 0.0
    %1073 = vmatpush1.msra.mxu0 0.0
    %1074 = vmatprep.subr.mxu0 0.0
    %1075 = vmatpush1.msra.mxu0 0.0
    %1076 = vmatprep.subr.mxu0 0.0
    %1077 = vmatpush1.msra.mxu0 0.0
    %1078 = vmatprep.subr.mxu0 0.0
    %1079 = vmatpush1.msra.mxu0 0.0
    %1080 = vmatprep.subr.mxu0 0.0
    %1081 = vmatpush1.msra.mxu0 0.0
    %1082 = vmatprep.subr.mxu0 0.0
    %1083 = vmatpush1.msra.mxu0 0.0
    %1084 = vmatprep.subr.mxu0 0.0
    %1085 = vmatpush1.msra.mxu0 0.0
    %1086 = vmatprep.subr.mxu0 0.0
    %1087 = vmatpush1.msra.mxu0 0.0
    %1088 = vmatprep.subr.mxu0 0.0
    %1089 = vmatpush1.msra.mxu0 0.0
    %1090 = vmatprep.subr.mxu0 0.0
    %1091 = vmatpush1.msra.mxu0 0.0
    %1092 = vmatprep.subr.mxu0 0.0
    %1093 = vmatpush1.msra.mxu0 0.0
    %1094 = vmatprep.subr.mxu0 0.0
    %1095 = vmatpush1.msra.mxu0 0.0
    %1096 = vmatprep.subr.mxu0 0.0
    %1097 = vmatpush1.msra.mxu0 0.0
    %1098 = vmatprep.subr.mxu0 0.0
    %1099 = vmatpush1.msra.mxu0 0.0
    %1100 = vmatprep.subr.mxu0 0.0
    %1101 = vmatpush1.msra.mxu0 0.0
    %1102 = vmatprep.subr.mxu0 0.0
    %1103 = vmatpush1.msra.mxu0 0.0
    %1104 = vmatprep.subr.mxu0 0.0
    %1105 = vmatpush1.msra.mxu0 0.0
    %1106 = vmatprep.subr.mxu0 0.0
    %1107 = vmatpush1.msra.mxu0 0.0
    %1108 = vmatprep.subr.mxu0 0.0
    %1109 = vmatpush1.msra.mxu0 0.0
    %1110 = vmatprep.subr.mxu0 0.0
    %1111 = vmatpush1.msra.mxu0 0.0
    %1112 = vmatprep.subr.mxu0 0.0
    %1113 = vmatpush1.msra.mxu0 0.0
    %1114 = vmatprep.subr.mxu0 0.0
    %1115 = vmatpush1.msra.mxu0 0.0
    %1116 = vmatprep.subr.mxu0 0.0
    %1117 = vmatpush1.msra.mxu0 0.0
    %1118 = vmatprep.subr.mxu0 0.0
    %1119 = vmatpush1.msra.mxu0 0.0
    %1120 = vmatprep.subr.mxu0 0.0
    %1121 = vmatpush1.msra.mxu0 0.0
    %1122 = vmatprep.subr.mxu0 0.0
    %1123 = vmatpush1.msra.mxu0 0.0
    %1124 = vmatprep.mubr.f32.mxu0 0.0
    %1125 = vmatmul.mubr.f32.gmra.mrb[0].mxu0 %v963
    %v1126 = vpop.f32.mrb[0].mxu0
    %v1127 = vadd.f32 0.0, %v1126
    %v1128 = vpop.f32.mrb[0].mxu0
    %v1129 = vadd.f32 0.0, %v1128
    %1130 = vdwg.mxu0
    %1131 = vmatprep.subr.mxu0 %v981
    %1132 = vmatpush1.msra.mxu0 %v978
    %1133 = vmatprep.subr.mxu0 0.0
    %1134 = vmatpush1.msra.mxu0 0.0
    %1135 = vmatprep.subr.mxu0 0.0
    %1136 = vmatpush1.msra.mxu0 0.0
    %1137 = vmatprep.subr.mxu0 0.0
    %1138 = vmatpush1.msra.mxu0 0.0
    %1139 = vmatprep.subr.mxu0 0.0
    %1140 = vmatpush1.msra.mxu0 0.0
    %1141 = vmatprep.subr.mxu0 0.0
    %1142 = vmatpush1.msra.mxu0 0.0
    %1143 = vmatprep.subr.mxu0 0.0
    %1144 = vmatpush1.msra.mxu0 0.0
    %1145 = vmatprep.subr.mxu0 0.0
    %1146 = vmatpush1.msra.mxu0 0.0
    %1147 = vmatprep.subr.mxu0 0.0
    %1148 = vmatpush1.msra.mxu0 0.0
    %1149 = vmatprep.subr.mxu0 0.0
    %1150 = vmatpush1.msra.mxu0 0.0
    %1151 = vmatprep.subr.mxu0 0.0
    %1152 = vmatpush1.msra.mxu0 0.0
    %1153 = vmatprep.subr.mxu0 0.0
    %1154 = vmatpush1.msra.mxu0 0.0
    %1155 = vmatprep.subr.mxu0 0.0
    %1156 = vmatpush1.msra.mxu0 0.0
    %1157 = vmatprep.subr.mxu0 0.0
    %1158 = vmatpush1.msra.mxu0 0.0
    %1159 = vmatprep.subr.mxu0 0.0
    %1160 = vmatpush1.msra.mxu0 0.0
    %1161 = vmatprep.subr.mxu0 0.0
    %1162 = vmatpush1.msra.mxu0 0.0
    %1163 = vmatprep.subr.mxu0 0.0
    %1164 = vmatpush1.msra.mxu0 0.0
    %1165 = vmatprep.subr.mxu0 0.0
    %1166 = vmatpush1.msra.mxu0 0.0
    %1167 = vmatprep.subr.mxu0 0.0
    %1168 = vmatpush1.msra.mxu0 0.0
    %1169 = vmatprep.subr.mxu0 0.0
    %1170 = vmatpush1.msra.mxu0 0.0
    %1171 = vmatprep.subr.mxu0 0.0
    %1172 = vmatpush1.msra.mxu0 0.0
    %1173 = vmatprep.subr.mxu0 0.0
    %1174 = vmatpush1.msra.mxu0 0.0
    %1175 = vmatprep.subr.mxu0 0.0
    %1176 = vmatpush1.msra.mxu0 0.0
    %1177 = vmatprep.subr.mxu0 0.0
    %1178 = vmatpush1.msra.mxu0 0.0
    %1179 = vmatprep.subr.mxu0 0.0
    %1180 = vmatpush1.msra.mxu0 0.0
    %1181 = vmatprep.subr.mxu0 0.0
    %1182 = vmatpush1.msra.mxu0 0.0
    %1183 = vmatprep.subr.mxu0 0.0
    %1184 = vmatpush1.msra.mxu0 0.0
    %1185 = vmatprep.subr.mxu0 0.0
    %1186 = vmatpush1.msra.mxu0 0.0
    %1187 = vmatprep.subr.mxu0 0.0
    %1188 = vmatpush1.msra.mxu0 0.0
    %1189 = vmatprep.subr.mxu0 0.0
    %1190 = vmatpush1.msra.mxu0 0.0
    %1191 = vmatprep.subr.mxu0 0.0
    %1192 = vmatpush1.msra.mxu0 0.0
    %1193 = vmatprep.subr.mxu0 0.0
    %1194 = vmatpush1.msra.mxu0 0.0
    %1195 = vmatprep.mubr.f32.mxu0 0.0
    %1196 = vmatmul.mubr.f32.gmra.mrb[0].mxu0 %v963
    %v1197 = vpop.f32.mrb[0].mxu0
    %v1198 = vadd.f32 0.0, %v1197
    %v1199 = vpop.f32.mrb[0].mxu0
    %v1200 = vadd.f32 0.0, %v1199
    %1201 = vdwg.mxu0
    %1202 = vmatprep.subr.mxu0 %v987
    %1203 = vmatpush1.msra.mxu0 %v984
    %1204 = vmatprep.subr.mxu0 0.0
    %1205 = vmatpush1.msra.mxu0 0.0
    %1206 = vmatprep.subr.mxu0 0.0
    %1207 = vmatpush1.msra.mxu0 0.0
    %1208 = vmatprep.subr.mxu0 0.0
    %1209 = vmatpush1.msra.mxu0 0.0
    %1210 = vmatprep.subr.mxu0 0.0
    %1211 = vmatpush1.msra.mxu0 0.0
    %1212 = vmatprep.subr.mxu0 0.0
    %1213 = vmatpush1.msra.mxu0 0.0
    %1214 = vmatprep.subr.mxu0 0.0
    %1215 = vmatpush1.msra.mxu0 0.0
    %1216 = vmatprep.subr.mxu0 0.0
    %1217 = vmatpush1.msra.mxu0 0.0
    %1218 = vmatprep.subr.mxu0 0.0
    %1219 = vmatpush1.msra.mxu0 0.0
    %1220 = vmatprep.subr.mxu0 0.0
    %1221 = vmatpush1.msra.mxu0 0.0
    %1222 = vmatprep.subr.mxu0 0.0
    %1223 = vmatpush1.msra.mxu0 0.0
    %1224 = vmatprep.subr.mxu0 0.0
    %1225 = vmatpush1.msra.mxu0 0.0
    %1226 = vmatprep.subr.mxu0 0.0
    %1227 = vmatpush1.msra.mxu0 0.0
    %1228 = vmatprep.subr.mxu0 0.0
    %1229 = vmatpush1.msra.mxu0 0.0
    %1230 = vmatprep.subr.mxu0 0.0
    %1231 = vmatpush1.msra.mxu0 0.0
    %1232 = vmatprep.subr.mxu0 0.0
    %1233 = vmatpush1.msra.mxu0 0.0
    %1234 = vmatprep.subr.mxu0 0.0
    %1235 = vmatpush1.msra.mxu0 0.0
    %1236 = vmatprep.subr.mxu0 0.0
    %1237 = vmatpush1.msra.mxu0 0.0
    %1238 = vmatprep.subr.mxu0 0.0
    %1239 = vmatpush1.msra.mxu0 0.0
    %1240 = vmatprep.subr.mxu0 0.0
    %1241 = vmatpush1.msra.mxu0 0.0
    %1242 = vmatprep.subr.mxu0 0.0
    %1243 = vmatpush1.msra.mxu0 0.0
    %1244 = vmatprep.subr.mxu0 0.0
    %1245 = vmatpush1.msra.mxu0 0.0
    %1246 = vmatprep.subr.mxu0 0.0
    %1247 = vmatpush1.msra.mxu0 0.0
    %1248 = vmatprep.subr.mxu0 0.0
    %1249 = vmatpush1.msra.mxu0 0.0
    %1250 = vmatprep.subr.mxu0 0.0
    %1251 = vmatpush1.msra.mxu0 0.0
    %1252 = vmatprep.subr.mxu0 0.0
    %1253 = vmatpush1.msra.mxu0 0.0
    %1254 = vmatprep.subr.mxu0 0.0
    %1255 = vmatpush1.msra.mxu0 0.0
    %1256 = vmatprep.subr.mxu0 0.0
    %1257 = vmatpush1.msra.mxu0 0.0
    %1258 = vmatprep.subr.mxu0 0.0
    %1259 = vmatpush1.msra.mxu0 0.0
    %1260 = vmatprep.subr.mxu0 0.0
    %1261 = vmatpush1.msra.mxu0 0.0
    %1262 = vmatprep.subr.mxu0 0.0
    %1263 = vmatpush1.msra.mxu0 0.0
    %1264 = vmatprep.subr.mxu0 0.0
    %1265 = vmatpush1.msra.mxu0 0.0
    %1266 = vmatprep.mubr.f32.mxu0 0.0
    %1267 = vmatmul.mubr.f32.gmra.mrb[0].mxu0 %v963
    %v1268 = vpop.f32.mrb[0].mxu0
    %v1269 = vadd.f32 0.0, %v1268
    %v1270 = vpop.f32.mrb[0].mxu0
    %v1271 = vadd.f32 0.0, %v1270
    %1272 = vdwg.mxu0
    %v1273 = vld [vmem:[%s1] sm:$0xff]
    %v1274 = vld [vmem:[%s1 + $0x8] sm:$0xff]
    %v1275 = vld [vmem:[%s1 + $0x10] sm:$0xff]
    %v1276 = vld [vmem:[%s1 + $0x18] sm:$0xff]
    %v1277 = vld [vmem:[%s1 + $0x20] sm:$0xff]
    %v1278 = vld [vmem:[%s1 + $0x28] sm:$0xff]
    %v1279 = vld [vmem:[%s1 + $0x30] sm:$0xff]
    %v1280 = vld [vmem:[%s1 + $0x38] sm:$0xff]
    %v1281 = vld [vmem:[%s1 + $0x40] sm:$0xff]
    %v1282 = vld [vmem:[%s1 + $0x48] sm:$0xff]
    %v1283 = vld [vmem:[%s1 + $0x50] sm:$0xff]
    %v1284 = vld [vmem:[%s1 + $0x58] sm:$0xff]
    %v1285 = vld [vmem:[%s1 + $0x60] sm:$0xff]
    %v1286 = vld [vmem:[%s1 + $0x68] sm:$0xff]
    %v1287 = vld [vmem:[%s1 + $0x70] sm:$0xff]
    %v1288 = vld [vmem:[%s1 + $0x78] sm:$0xff]
    %v1289 = vld [vmem:[%s1 + $0x80] sm:$0xff]
    %v1290 = vld [vmem:[%s1 + $0x88] sm:$0xff]
    %v1291 = vld [vmem:[%s1 + $0x90] sm:$0xff]
    %v1292 = vld [vmem:[%s1 + $0x98] sm:$0xff]
    %v1293 = vld [vmem:[%s1 + $0xa0] sm:$0xff]
    %v1294 = vld [vmem:[%s1 + $0xa8] sm:$0xff]
    %v1295 = vld [vmem:[%s1 + $0xb0] sm:$0xff]
    %v1296 = vld [vmem:[%s1 + $0xb8] sm:$0xff]
    %v1297 = vld [vmem:[%s1 + $0xc0] sm:$0xff]
    %v1298 = vld [vmem:[%s1 + $0xc8] sm:$0xff]
    %v1299 = vld [vmem:[%s1 + $0xd0] sm:$0xff]
    %v1300 = vld [vmem:[%s1 + $0xd8] sm:$0xff]
    %v1301 = vld [vmem:[%s1 + $0xe0] sm:$0xff]
    %v1302 = vld [vmem:[%s1 + $0xe8] sm:$0xff]
    %v1303 = vld [vmem:[%s1 + $0xf0] sm:$0xff]
    %v1304 = vld [vmem:[%s1 + $0xf8] sm:$0xff]
    %v1305 = vld [vmem:[%s1 + $0x100] sm:$0xff]
    %v1306 = vld [vmem:[%s1 + $0x108] sm:$0xff]
    %v1307 = vld [vmem:[%s1 + $0x110] sm:$0xff]
    %v1308 = vld [vmem:[%s1 + $0x118] sm:$0xff]
    %v1309 = vld [vmem:[%s1 + $0x120] sm:$0xff]
    %v1310 = vld [vmem:[%s1 + $0x128] sm:$0xff]
    %v1311 = vld [vmem:[%s1 + $0x130] sm:$0xff]
    %v1312 = vld [vmem:[%s1 + $0x138] sm:$0xff]
    %v1313 = vld [vmem:[%s1 + $0x140] sm:$0xff]
    %v1314 = vld [vmem:[%s1 + $0x148] sm:$0xff]
    %v1315 = vld [vmem:[%s1 + $0x150] sm:$0xff]
    %v1316 = vld [vmem:[%s1 + $0x158] sm:$0xff]
    %v1317 = vld [vmem:[%s1 + $0x160] sm:$0xff]
    %v1318 = vld [vmem:[%s1 + $0x168] sm:$0xff]
    %v1319 = vld [vmem:[%s1 + $0x170] sm:$0xff]
    %v1320 = vld [vmem:[%s1 + $0x178] sm:$0xff]
    %v1321 = vld [vmem:[%s1 + $0x180] sm:$0xff]
    %v1322 = vld [vmem:[%s1 + $0x188] sm:$0xff]
    %v1323 = vld [vmem:[%s1 + $0x190] sm:$0xff]
    %v1324 = vld [vmem:[%s1 + $0x198] sm:$0xff]
    %v1325 = vld [vmem:[%s1 + $0x1a0] sm:$0xff]
    %v1326 = vld [vmem:[%s1 + $0x1a8] sm:$0xff]
    %v1327 = vld [vmem:[%s1 + $0x1b0] sm:$0xff]
    %v1328 = vld [vmem:[%s1 + $0x1b8] sm:$0xff]
    %v1329 = vld [vmem:[%s1 + $0x1c0] sm:$0xff]
    %v1330 = vld [vmem:[%s1 + $0x1c8] sm:$0xff]
    %v1331 = vld [vmem:[%s1 + $0x1d0] sm:$0xff]
    %v1332 = vld [vmem:[%s1 + $0x1d8] sm:$0xff]
    %v1333 = vld [vmem:[%s1 + $0x1e0] sm:$0xff]
    %v1334 = vld [vmem:[%s1 + $0x1e8] sm:$0xff]
    %v1335 = vld [vmem:[%s1 + $0x1f0] sm:$0xff]
    %v1336 = vld [vmem:[%s1 + $0x1f8] sm:$0xff]
    %v1337 = vld [vmem:[%s1 + $0x200] sm:$0xff]
    %v1338 = vld [vmem:[%s1 + $0x208] sm:$0xff]
    %v1339 = vld [vmem:[%s1 + $0x210] sm:$0xff]
    %v1340 = vld [vmem:[%s1 + $0x218] sm:$0xff]
    %v1341 = vld [vmem:[%s1 + $0x220] sm:$0xff]
    %v1342 = vld [vmem:[%s1 + $0x228] sm:$0xff]
    %v1343 = vld [vmem:[%s1 + $0x230] sm:$0xff]
    %v1344 = vld [vmem:[%s1 + $0x238] sm:$0xff]
    %v1345 = vld [vmem:[%s1 + $0x240] sm:$0xff]
    %v1346 = vld [vmem:[%s1 + $0x248] sm:$0xff]
    %v1347 = vld [vmem:[%s1 + $0x250] sm:$0xff]
    %v1348 = vld [vmem:[%s1 + $0x258] sm:$0xff]
    %v1349 = vld [vmem:[%s1 + $0x260] sm:$0xff]
    %v1350 = vld [vmem:[%s1 + $0x268] sm:$0xff]
    %v1351 = vld [vmem:[%s1 + $0x270] sm:$0xff]
    %v1352 = vld [vmem:[%s1 + $0x278] sm:$0xff]
    %v1353 = vld [vmem:[%s1 + $0x280] sm:$0xff]
    %v1354 = vld [vmem:[%s1 + $0x288] sm:$0xff]
    %v1355 = vld [vmem:[%s1 + $0x290] sm:$0xff]
    %v1356 = vld [vmem:[%s1 + $0x298] sm:$0xff]
    %v1357 = vld [vmem:[%s1 + $0x2a0] sm:$0xff]
    %v1358 = vld [vmem:[%s1 + $0x2a8] sm:$0xff]
    %v1359 = vld [vmem:[%s1 + $0x2b0] sm:$0xff]
    %v1360 = vld [vmem:[%s1 + $0x2b8] sm:$0xff]
    %v1361 = vld [vmem:[%s1 + $0x2c0] sm:$0xff]
    %v1362 = vld [vmem:[%s1 + $0x2c8] sm:$0xff]
    %v1363 = vld [vmem:[%s1 + $0x2d0] sm:$0xff]
    %v1364 = vld [vmem:[%s1 + $0x2d8] sm:$0xff]
    %v1365 = vld [vmem:[%s1 + $0x2e0] sm:$0xff]
    %v1366 = vld [vmem:[%s1 + $0x2e8] sm:$0xff]
    %v1367 = vld [vmem:[%s1 + $0x2f0] sm:$0xff]
    %v1368 = vld [vmem:[%s1 + $0x2f8] sm:$0xff]
    %v1369 = vld [vmem:[%s1 + $0x300] sm:$0xff]
    %v1370 = vld [vmem:[%s1 + $0x308] sm:$0xff]
    %v1371 = vld [vmem:[%s1 + $0x310] sm:$0xff]
    %v1372 = vld [vmem:[%s1 + $0x318] sm:$0xff]
    %v1373 = vld [vmem:[%s1 + $0x320] sm:$0xff]
    %v1374 = vld [vmem:[%s1 + $0x328] sm:$0xff]
    %v1375 = vld [vmem:[%s1 + $0x330] sm:$0xff]
    %v1376 = vld [vmem:[%s1 + $0x338] sm:$0xff]
    %v1377 = vld [vmem:[%s1 + $0x340] sm:$0xff]
    %v1378 = vld [vmem:[%s1 + $0x348] sm:$0xff]
    %v1379 = vld [vmem:[%s1 + $0x350] sm:$0xff]
    %v1380 = vld [vmem:[%s1 + $0x358] sm:$0xff]
    %v1381 = vld [vmem:[%s1 + $0x360] sm:$0xff]
    %v1382 = vld [vmem:[%s1 + $0x368] sm:$0xff]
    %v1383 = vld [vmem:[%s1 + $0x370] sm:$0xff]
    %v1384 = vld [vmem:[%s1 + $0x378] sm:$0xff]
    %v1385 = vld [vmem:[%s1 + $0x380] sm:$0xff]
    %v1386 = vld [vmem:[%s1 + $0x388] sm:$0xff]
    %v1387 = vld [vmem:[%s1 + $0x390] sm:$0xff]
    %v1388 = vld [vmem:[%s1 + $0x398] sm:$0xff]
    %v1389 = vld [vmem:[%s1 + $0x3a0] sm:$0xff]
    %v1390 = vld [vmem:[%s1 + $0x3a8] sm:$0xff]
    %v1391 = vld [vmem:[%s1 + $0x3b0] sm:$0xff]
    %v1392 = vld [vmem:[%s1 + $0x3b8] sm:$0xff]
    %v1393 = vld [vmem:[%s1 + $0x3c0] sm:$0xff]
    %v1394 = vld [vmem:[%s1 + $0x3c8] sm:$0xff]
    %v1395 = vld [vmem:[%s1 + $0x3d0] sm:$0xff]
    %v1396 = vld [vmem:[%s1 + $0x3d8] sm:$0xff]
    %v1397 = vld [vmem:[%s1 + $0x3e0] sm:$0xff]
    %v1398 = vld [vmem:[%s1 + $0x3e8] sm:$0xff]
    %v1399 = vld [vmem:[%s1 + $0x3f0] sm:$0xff]
    %v1400 = vld [vmem:[%s1 + $0x3f8] sm:$0xff]
    %1401 = vxpose.xlu0.b32.start [1/16] %v1273, 128
    %1402 = vxpose.xlu0.b32.cont [2/16] %v1274, 128
    %1403 = vxpose.xlu0.b32.cont [3/16] %v1275, 128
    %1404 = vxpose.xlu0.b32.cont [4/16] %v1276, 128
    %1405 = vxpose.xlu0.b32.cont [5/16] %v1277, 128
    %1406 = vxpose.xlu0.b32.cont [6/16] %v1278, 128
    %1407 = vxpose.xlu0.b32.cont [7/16] %v1279, 128
    %1408 = vxpose.xlu0.b32.cont [8/16] %v1280, 128
    %1409 = vxpose.xlu0.b32.cont [9/16] %v1281, 128
    %1410 = vxpose.xlu0.b32.cont [10/16] %v1282, 128
    %1411 = vxpose.xlu0.b32.cont [11/16] %v1283, 128
    %1412 = vxpose.xlu0.b32.cont [12/16] %v1284, 128
    %1413 = vxpose.xlu0.b32.cont [13/16] %v1285, 128
    %1414 = vxpose.xlu0.b32.cont [14/16] %v1286, 128
    %1415 = vxpose.xlu0.b32.cont [15/16] %v1287, 128
    %1416 = vxpose.xlu0.b32.end [16/16] %v1288, 128
    %v1417 = vpop.trf.xlu0
    %v1418 = vpop.trf.xlu0
    %v1419 = vpop.trf.xlu0
    %v1420 = vpop.trf.xlu0
    %v1421 = vpop.trf.xlu0
    %v1422 = vpop.trf.xlu0
    %v1423 = vpop.trf.xlu0
    %v1424 = vpop.trf.xlu0
    %v1425 = vpop.trf.xlu0
    %v1426 = vpop.trf.xlu0
    %v1427 = vpop.trf.xlu0
    %v1428 = vpop.trf.xlu0
    %v1429 = vpop.trf.xlu0
    %v1430 = vpop.trf.xlu0
    %v1431 = vpop.trf.xlu0
    %v1432 = vpop.trf.xlu0
    %1433 = vxpose.xlu0.b32.start [1/16] %v1289, 128
    %1434 = vxpose.xlu0.b32.cont [2/16] %v1290, 128
    %1435 = vxpose.xlu0.b32.cont [3/16] %v1291, 128
    %1436 = vxpose.xlu0.b32.cont [4/16] %v1292, 128
    %1437 = vxpose.xlu0.b32.cont [5/16] %v1293, 128
    %1438 = vxpose.xlu0.b32.cont [6/16] %v1294, 128
    %1439 = vxpose.xlu0.b32.cont [7/16] %v1295, 128
    %1440 = vxpose.xlu0.b32.cont [8/16] %v1296, 128
    %1441 = vxpose.xlu0.b32.cont [9/16] %v1297, 128
    %1442 = vxpose.xlu0.b32.cont [10/16] %v1298, 128
    %1443 = vxpose.xlu0.b32.cont [11/16] %v1299, 128
    %1444 = vxpose.xlu0.b32.cont [12/16] %v1300, 128
    %1445 = vxpose.xlu0.b32.cont [13/16] %v1301, 128
    %1446 = vxpose.xlu0.b32.cont [14/16] %v1302, 128
    %1447 = vxpose.xlu0.b32.cont [15/16] %v1303, 128
    %1448 = vxpose.xlu0.b32.end [16/16] %v1304, 128
    %v1449 = vpop.trf.xlu0
    %v1450 = vpop.trf.xlu0
    %v1451 = vpop.trf.xlu0
    %v1452 = vpop.trf.xlu0
    %v1453 = vpop.trf.xlu0
    %v1454 = vpop.trf.xlu0
    %v1455 = vpop.trf.xlu0
    %v1456 = vpop.trf.xlu0
    %v1457 = vpop.trf.xlu0
    %v1458 = vpop.trf.xlu0
    %v1459 = vpop.trf.xlu0
    %v1460 = vpop.trf.xlu0
    %v1461 = vpop.trf.xlu0
    %v1462 = vpop.trf.xlu0
    %v1463 = vpop.trf.xlu0
    %v1464 = vpop.trf.xlu0
    %1465 = vxpose.xlu0.b32.start [1/16] %v1305, 128
    %1466 = vxpose.xlu0.b32.cont [2/16] %v1306, 128
    %1467 = vxpose.xlu0.b32.cont [3/16] %v1307, 128
    %1468 = vxpose.xlu0.b32.cont [4/16] %v1308, 128
    %1469 = vxpose.xlu0.b32.cont [5/16] %v1309, 128
    %1470 = vxpose.xlu0.b32.cont [6/16] %v1310, 128
    %1471 = vxpose.xlu0.b32.cont [7/16] %v1311, 128
    %1472 = vxpose.xlu0.b32.cont [8/16] %v1312, 128
    %1473 = vxpose.xlu0.b32.cont [9/16] %v1313, 128
    %1474 = vxpose.xlu0.b32.cont [10/16] %v1314, 128
    %1475 = vxpose.xlu0.b32.cont [11/16] %v1315, 128
    %1476 = vxpose.xlu0.b32.cont [12/16] %v1316, 128
    %1477 = vxpose.xlu0.b32.cont [13/16] %v1317, 128
    %1478 = vxpose.xlu0.b32.cont [14/16] %v1318, 128
    %1479 = vxpose.xlu0.b32.cont [15/16] %v1319, 128
    %1480 = vxpose.xlu0.b32.end [16/16] %v1320, 128
    %v1481 = vpop.trf.xlu0
    %v1482 = vpop.trf.xlu0
    %v1483 = vpop.trf.xlu0
    %v1484 = vpop.trf.xlu0
    %v1485 = vpop.trf.xlu0
    %v1486 = vpop.trf.xlu0
    %v1487 = vpop.trf.xlu0
    %v1488 = vpop.trf.xlu0
    %v1489 = vpop.trf.xlu0
    %v1490 = vpop.trf.xlu0
    %v1491 = vpop.trf.xlu0
    %v1492 = vpop.trf.xlu0
    %v1493 = vpop.trf.xlu0
    %v1494 = vpop.trf.xlu0
    %v1495 = vpop.trf.xlu0
    %v1496 = vpop.trf.xlu0
    %1497 = vxpose.xlu0.b32.start [1/16] %v1321, 128
    %1498 = vxpose.xlu0.b32.cont [2/16] %v1322, 128
    %1499 = vxpose.xlu0.b32.cont [3/16] %v1323, 128
    %1500 = vxpose.xlu0.b32.cont [4/16] %v1324, 128
    %1501 = vxpose.xlu0.b32.cont [5/16] %v1325, 128
    %1502 = vxpose.xlu0.b32.cont [6/16] %v1326, 128
    %1503 = vxpose.xlu0.b32.cont [7/16] %v1327, 128
    %1504 = vxpose.xlu0.b32.cont [8/16] %v1328, 128
    %1505 = vxpose.xlu0.b32.cont [9/16] %v1329, 128
    %1506 = vxpose.xlu0.b32.cont [10/16] %v1330, 128
    %1507 = vxpose.xlu0.b32.cont [11/16] %v1331, 128
    %1508 = vxpose.xlu0.b32.cont [12/16] %v1332, 128
    %1509 = vxpose.xlu0.b32.cont [13/16] %v1333, 128
    %1510 = vxpose.xlu0.b32.cont [14/16] %v1334, 128
    %1511 = vxpose.xlu0.b32.cont [15/16] %v1335, 128
    %1512 = vxpose.xlu0.b32.end [16/16] %v1336, 128
    %v1513 = vpop.trf.xlu0
    %v1514 = vpop.trf.xlu0
    %v1515 = vpop.trf.xlu0
    %v1516 = vpop.trf.xlu0
    %v1517 = vpop.trf.xlu0
    %v1518 = vpop.trf.xlu0
    %v1519 = vpop.trf.xlu0
    %v1520 = vpop.trf.xlu0
    %v1521 = vpop.trf.xlu0
    %v1522 = vpop.trf.xlu0
    %v1523 = vpop.trf.xlu0
    %v1524 = vpop.trf.xlu0
    %v1525 = vpop.trf.xlu0
    %v1526 = vpop.trf.xlu0
    %v1527 = vpop.trf.xlu0
    %v1528 = vpop.trf.xlu0
    %1529 = vxpose.xlu0.b32.start [1/16] %v1337, 128
    %1530 = vxpose.xlu0.b32.cont [2/16] %v1338, 128
    %1531 = vxpose.xlu0.b32.cont [3/16] %v1339, 128
    %1532 = vxpose.xlu0.b32.cont [4/16] %v1340, 128
    %1533 = vxpose.xlu0.b32.cont [5/16] %v1341, 128
    %1534 = vxpose.xlu0.b32.cont [6/16] %v1342, 128
    %1535 = vxpose.xlu0.b32.cont [7/16] %v1343, 128
    %1536 = vxpose.xlu0.b32.cont [8/16] %v1344, 128
    %1537 = vxpose.xlu0.b32.cont [9/16] %v1345, 128
    %1538 = vxpose.xlu0.b32.cont [10/16] %v1346, 128
    %1539 = vxpose.xlu0.b32.cont [11/16] %v1347, 128
    %1540 = vxpose.xlu0.b32.cont [12/16] %v1348, 128
    %1541 = vxpose.xlu0.b32.cont [13/16] %v1349, 128
    %1542 = vxpose.xlu0.b32.cont [14/16] %v1350, 128
    %1543 = vxpose.xlu0.b32.cont [15/16] %v1351, 128
    %1544 = vxpose.xlu0.b32.end [16/16] %v1352, 128
    %v1545 = vpop.trf.xlu0
    %v1546 = vpop.trf.xlu0
    %v1547 = vpop.trf.xlu0
    %v1548 = vpop.trf.xlu0
    %v1549 = vpop.trf.xlu0
    %v1550 = vpop.trf.xlu0
    %v1551 = vpop.trf.xlu0
    %v1552 = vpop.trf.xlu0
    %v1553 = vpop.trf.xlu0
    %v1554 = vpop.trf.xlu0
    %v1555 = vpop.trf.xlu0
    %v1556 = vpop.trf.xlu0
    %v1557 = vpop.trf.xlu0
    %v1558 = vpop.trf.xlu0
    %v1559 = vpop.trf.xlu0
    %v1560 = vpop.trf.xlu0
    %1561 = vxpose.xlu0.b32.start [1/16] %v1353, 128
    %1562 = vxpose.xlu0.b32.cont [2/16] %v1354, 128
    %1563 = vxpose.xlu0.b32.cont [3/16] %v1355, 128
    %1564 = vxpose.xlu0.b32.cont [4/16] %v1356, 128
    %1565 = vxpose.xlu0.b32.cont [5/16] %v1357, 128
    %1566 = vxpose.xlu0.b32.cont [6/16] %v1358, 128
    %1567 = vxpose.xlu0.b32.cont [7/16] %v1359, 128
    %1568 = vxpose.xlu0.b32.cont [8/16] %v1360, 128
    %1569 = vxpose.xlu0.b32.cont [9/16] %v1361, 128
    %1570 = vxpose.xlu0.b32.cont [10/16] %v1362, 128
    %1571 = vxpose.xlu0.b32.cont [11/16] %v1363, 128
    %1572 = vxpose.xlu0.b32.cont [12/16] %v1364, 128
    %1573 = vxpose.xlu0.b32.cont [13/16] %v1365, 128
    %1574 = vxpose.xlu0.b32.cont [14/16] %v1366, 128
    %1575 = vxpose.xlu0.b32.cont [15/16] %v1367, 128
    %1576 = vxpose.xlu0.b32.end [16/16] %v1368, 128
    %v1577 = vpop.trf.xlu0
    %v1578 = vpop.trf.xlu0
    %v1579 = vpop.trf.xlu0
    %v1580 = vpop.trf.xlu0
    %v1581 = vpop.trf.xlu0
    %v1582 = vpop.trf.xlu0
    %v1583 = vpop.trf.xlu0
    %v1584 = vpop.trf.xlu0
    %v1585 = vpop.trf.xlu0
    %v1586 = vpop.trf.xlu0
    %v1587 = vpop.trf.xlu0
    %v1588 = vpop.trf.xlu0
    %v1589 = vpop.trf.xlu0
    %v1590 = vpop.trf.xlu0
    %v1591 = vpop.trf.xlu0
    %v1592 = vpop.trf.xlu0
    %1593 = vxpose.xlu0.b32.start [1/16] %v1369, 128
    %1594 = vxpose.xlu0.b32.cont [2/16] %v1370, 128
    %1595 = vxpose.xlu0.b32.cont [3/16] %v1371, 128
    %1596 = vxpose.xlu0.b32.cont [4/16] %v1372, 128
    %1597 = vxpose.xlu0.b32.cont [5/16] %v1373, 128
    %1598 = vxpose.xlu0.b32.cont [6/16] %v1374, 128
    %1599 = vxpose.xlu0.b32.cont [7/16] %v1375, 128
    %1600 = vxpose.xlu0.b32.cont [8/16] %v1376, 128
    %1601 = vxpose.xlu0.b32.cont [9/16] %v1377, 128
    %1602 = vxpose.xlu0.b32.cont [10/16] %v1378, 128
    %1603 = vxpose.xlu0.b32.cont [11/16] %v1379, 128
    %1604 = vxpose.xlu0.b32.cont [12/16] %v1380, 128
    %1605 = vxpose.xlu0.b32.cont [13/16] %v1381, 128
    %1606 = vxpose.xlu0.b32.cont [14/16] %v1382, 128
    %1607 = vxpose.xlu0.b32.cont [15/16] %v1383, 128
    %1608 = vxpose.xlu0.b32.end [16/16] %v1384, 128
    %v1609 = vpop.trf.xlu0
    %v1610 = vpop.trf.xlu0
    %v1611 = vpop.trf.xlu0
    %v1612 = vpop.trf.xlu0
    %v1613 = vpop.trf.xlu0
    %v1614 = vpop.trf.xlu0
    %v1615 = vpop.trf.xlu0
    %v1616 = vpop.trf.xlu0
    %v1617 = vpop.trf.xlu0
    %v1618 = vpop.trf.xlu0
    %v1619 = vpop.trf.xlu0
    %v1620 = vpop.trf.xlu0
    %v1621 = vpop.trf.xlu0
    %v1622 = vpop.trf.xlu0
    %v1623 = vpop.trf.xlu0
    %v1624 = vpop.trf.xlu0
    %1625 = vxpose.xlu0.b32.start [1/16] %v1385, 128
    %1626 = vxpose.xlu0.b32.cont [2/16] %v1386, 128
    %1627 = vxpose.xlu0.b32.cont [3/16] %v1387, 128
    %1628 = vxpose.xlu0.b32.cont [4/16] %v1388, 128
    %1629 = vxpose.xlu0.b32.cont [5/16] %v1389, 128
    %1630 = vxpose.xlu0.b32.cont [6/16] %v1390, 128
    %1631 = vxpose.xlu0.b32.cont [7/16] %v1391, 128
    %1632 = vxpose.xlu0.b32.cont [8/16] %v1392, 128
    %1633 = vxpose.xlu0.b32.cont [9/16] %v1393, 128
    %1634 = vxpose.xlu0.b32.cont [10/16] %v1394, 128
    %1635 = vxpose.xlu0.b32.cont [11/16] %v1395, 128
    %1636 = vxpose.xlu0.b32.cont [12/16] %v1396, 128
    %1637 = vxpose.xlu0.b32.cont [13/16] %v1397, 128
    %1638 = vxpose.xlu0.b32.cont [14/16] %v1398, 128
    %1639 = vxpose.xlu0.b32.cont [15/16] %v1399, 128
    %1640 = vxpose.xlu0.b32.end [16/16] %v1400, 128
    %v1641 = vpop.trf.xlu0
    %v1642 = vpop.trf.xlu0
    %v1643 = vpop.trf.xlu0
    %v1644 = vpop.trf.xlu0
    %v1645 = vpop.trf.xlu0
    %v1646 = vpop.trf.xlu0
    %v1647 = vpop.trf.xlu0
    %v1648 = vpop.trf.xlu0
    %v1649 = vpop.trf.xlu0
    %v1650 = vpop.trf.xlu0
    %v1651 = vpop.trf.xlu0
    %v1652 = vpop.trf.xlu0
    %v1653 = vpop.trf.xlu0
    %v1654 = vpop.trf.xlu0
    %v1655 = vpop.trf.xlu0
    %v1656 = vpop.trf.xlu0
    %v1657 = vmul.f32 %v1417, %v1056
    %v1658 = vmul.f32 %v1449, %v1058
    %v1659 = vmul.f32 %v1481, %v1127
    %v1660 = vmul.f32 %v1513, %v1129
    %v1661 = vmul.f32 %v1545, %v1198
    %v1662 = vmul.f32 %v1577, %v1200
    %v1663 = vmul.f32 %v1609, %v1269
    %v1664 = vmul.f32 %v1641, %v1271
    %vm1665 = vcmask 1043456
    %v1666 = vsel %vm1665, %v1657, 0.0
    %v1667 = vrot.slane %v1666, 4
    %v1668 = vadd.f32 %v1666, %v1667
    %v1669 = vrot.slane %v1668, 2
    %v1670 = vadd.f32 %v1668, %v1669
    %v1671 = vrot.slane %v1670, 1
    %v1672 = vadd.f32 %v1670, %v1671
    %v1673 = vsel %vm1665, %v1658, 0.0
    %v1674 = vrot.slane %v1673, 4
    %v1675 = vadd.f32 %v1673, %v1674
    %v1676 = vrot.slane %v1675, 2
    %v1677 = vadd.f32 %v1675, %v1676
    %v1678 = vrot.slane %v1677, 1
    %v1679 = vadd.f32 %v1677, %v1678
    %v1680 = vsel %vm1665, %v1659, 0.0
    %v1681 = vrot.slane %v1680, 4
    %v1682 = vadd.f32 %v1680, %v1681
    %v1683 = vrot.slane %v1682, 2
    %v1684 = vadd.f32 %v1682, %v1683
    %v1685 = vrot.slane %v1684, 1
    %v1686 = vadd.f32 %v1684, %v1685
    %v1687 = vsel %vm1665, %v1660, 0.0
    %v1688 = vrot.slane %v1687, 4
    %v1689 = vadd.f32 %v1687, %v1688
    %v1690 = vrot.slane %v1689, 2
    %v1691 = vadd.f32 %v1689, %v1690
    %v1692 = vrot.slane %v1691, 1
    %v1693 = vadd.f32 %v1691, %v1692
    %v1694 = vsel %vm1665, %v1661, 0.0
    %v1695 = vrot.slane %v1694, 4
    %v1696 = vadd.f32 %v1694, %v1695
    %v1697 = vrot.slane %v1696, 2
    %v1698 = vadd.f32 %v1696, %v1697
    %v1699 = vrot.slane %v1698, 1
    %v1700 = vadd.f32 %v1698, %v1699
    %v1701 = vsel %vm1665, %v1662, 0.0
    %v1702 = vrot.slane %v1701, 4
    %v1703 = vadd.f32 %v1701, %v1702
    %v1704 = vrot.slane %v1703, 2
    %v1705 = vadd.f32 %v1703, %v1704
    %v1706 = vrot.slane %v1705, 1
    %v1707 = vadd.f32 %v1705, %v1706
    %v1708 = vsel %vm1665, %v1663, 0.0
    %v1709 = vrot.slane %v1708, 4
    %v1710 = vadd.f32 %v1708, %v1709
    %v1711 = vrot.slane %v1710, 2
    %v1712 = vadd.f32 %v1710, %v1711
    %v1713 = vrot.slane %v1712, 1
    %v1714 = vadd.f32 %v1712, %v1713
    %v1715 = vsel %vm1665, %v1664, 0.0
    %v1716 = vrot.slane %v1715, 4
    %v1717 = vadd.f32 %v1715, %v1716
    %v1718 = vrot.slane %v1717, 2
    %v1719 = vadd.f32 %v1717, %v1718
    %v1720 = vrot.slane %v1719, 1
    %v1721 = vadd.f32 %v1719, %v1720
    %v1722 = vrcp.pop %v910
    %v1723 = vmul.f32 %v1672, %v1722
    %v1724 = vrcp.pop %v917
    %v1725 = vmul.f32 %v1679, %v1724
    %v1726 = vrcp.pop %v924
    %v1727 = vmul.f32 %v1686, %v1726
    %v1728 = vrcp.pop %v931
    %v1729 = vmul.f32 %v1693, %v1728
    %v1730 = vrcp.pop %v938
    %v1731 = vmul.f32 %v1700, %v1730
    %v1732 = vrcp.pop %v945
    %v1733 = vmul.f32 %v1707, %v1732
    %v1734 = vrcp.pop %v952
    %v1735 = vmul.f32 %v1714, %v1734
    %v1736 = vrcp.pop %v959
    %v1737 = vmul.f32 %v1721, %v1736
    %s1738 = sld [smem:[#allocation2]]
    %v1739 = vstv %s1738
    %v1740 = vadd.f32 %v1723, %v1739
    %v1741 = vadd.f32 %v1725, %v1739
    %v1742 = vadd.f32 %v1727, %v1739
    %v1743 = vadd.f32 %v1729, %v1739
    %v1744 = vadd.f32 %v1731, %v1739
    %v1745 = vadd.f32 %v1733, %v1739
    %v1746 = vadd.f32 %v1735, %v1739
    %v1747 = vadd.f32 %v1737, %v1739
    %v1756 = vcombine.low %v1740, %v1741
    %v1757 = vcombine.low %v1742, %v1743
    %v1758 = vcombine.low %v1744, %v1745
    %v1759 = vcombine.low %v1746, %v1747
    %v1761 = vunpack.c.l.s4 1966171168
    %v1762 = vunpack.c.0.s8 %v1761
    %v1763 = vlaneseq
    %v1764 = vshrl.u32 %v1763, 7
    %v1765 = vsub.s32 %v1762, %v1764
    %v1766 = vrot.slane %v1756, %v1765
    %v1768 = vunpack.c.l.s4 1966171168
    %v1769 = vunpack.c.0.s8 %v1768
    %v1770 = vlaneseq
    %v1771 = vshrl.u32 %v1770, 7
    %v1772 = vsub.s32 %v1769, %v1771
    %v1773 = vrot.slane %v1757, %v1772
    %v1775 = vunpack.c.l.s4 1966171168
    %v1776 = vunpack.c.0.s8 %v1775
    %v1777 = vlaneseq
    %v1778 = vshrl.u32 %v1777, 7
    %v1779 = vsub.s32 %v1776, %v1778
    %v1780 = vrot.slane %v1758, %v1779
    %v1782 = vunpack.c.l.s4 1966171168
    %v1783 = vunpack.c.0.s8 %v1782
    %v1784 = vlaneseq
    %v1785 = vshrl.u32 %v1784, 7
    %v1786 = vsub.s32 %v1783, %v1785
    %v1787 = vrot.slane %v1759, %v1786
    %v1788 = vcombine.low %v1766, %v1773
    %v1789 = vcombine.low %v1780, %v1787
    %v1791 = vunpack.c.l.s4 1966171168
    %v1792 = vunpack.c.0.s8 %v1791
    %v1793 = vlaneseq
    %v1794 = vshrl.u32 %v1793, 7
    %v1795 = vsub.s32 %v1792, %v1794
    %v1796 = vrot.slane %v1788, %v1795
    %v1798 = vunpack.c.l.s4 1966171168
    %v1799 = vunpack.c.0.s8 %v1798
    %v1800 = vlaneseq
    %v1801 = vshrl.u32 %v1800, 7
    %v1802 = vsub.s32 %v1799, %v1801
    %v1803 = vrot.slane %v1789, %v1802
    %v1804 = vcombine.low %v1796, %v1803
    %1806 = vst [vmem:[#allocation3] sm:$0xff] %v1804
    // Predicated region
    $region22: #{tpu_custom_call.1} parent=1 // pred_check
      _
    $region23: #{tpu_custom_call.1} parent=1 // pred_check_branch
      %1808 = sbr.rel (0) target = $region25
    $region24: #{tpu_custom_call.1} parent=1 // pred_region
      %s1810 = ssub.s32 128, 16
      %1811 = vsyncadd [#allocation4], %s1810
      %s1813 = sshll.u32 [#allocation3], 4
      %s1814 = int_to_ptr.vmem [resolvable:$true] %s1813
      %1816 = dma.vmem_to_hbm [thread:$0]  %s1814, 16, %s5, [#allocation4]
    $region25: #{tpu_custom_call.1} parent=1 // pred_fallthru
      _
    // Predicated region
    $region26: #{tpu_custom_call.1} parent=1 // pred_check
      _
    $region27: #{tpu_custom_call.1} parent=1 // pred_check_branch
      %1818 = sbr.rel (0) target = $region29
    $region28: #{tpu_custom_call.1} parent=1 // pred_region
      %1819 = dma.done [#allocation4], 128
    $region29: #{tpu_custom_call.1} parent=1 // pred_fallthru
      _
    %1820 = vsyncpa [#allocation4], 1

</llo_original>
